<compile_context>
chip_gen: v5e
topology: v5e:2x2
jax: 0.10.0
libtpu: 0.0.40
codegen_flags: <defaults>
</compile_context>

<pallas_src>
from math import sqrt

import jax
import jax.numpy as jnp
from jax import lax
from jax.experimental import pallas as pl
from jax.experimental.pallas import tpu as pltpu

HIDDEN = 32            # config.hidden_size
NUM_HEADS = 4          # config.num_attention_heads
HEAD_DIM = HIDDEN // NUM_HEADS
INTERMEDIATE = 64      # config.intermediate_size (FeedForward reconstructed)
LN_EPS = 1e-5          # nn.LayerNorm default eps
INV_SQRT_HD = 1.0 / sqrt(HEAD_DIM)


# ---------------------------------------------------------------------------
# in-kernel math helpers (pure jnp, traced inside the Pallas kernel)
# ---------------------------------------------------------------------------
def _layernorm(h, w, b):
    mu = jnp.mean(h, axis=-1, keepdims=True)
    var = jnp.mean(jnp.square(h - mu), axis=-1, keepdims=True)
    return (h - mu) * lax.rsqrt(var + LN_EPS) * w + b


def _mha(q_all, k_all, v_all, woc, boc):
    """Multi-head attention with the output/concat projection folded.

    q_all: (Nq, H*Dh)  -- softmax scale already folded into the Q projection
    k_all, v_all: (Nk, H*Dh)
    woc: (H*Dh, E) = stacked Wo[h] @ Wc[h]
    boc: (1, E)    = sum_h bo[h] @ Wc[h] + bc
    """
    heads = []
    for h in range(NUM_HEADS):                    # static unroll, 4 heads
        lo, hi = h * HEAD_DIM, (h + 1) * HEAD_DIM
        s = lax.dot_general(q_all[:, lo:hi], k_all[:, lo:hi],
                            (((1,), (1,)), ((), ())),
                            preferred_element_type=jnp.float32)
        m = jnp.max(s, axis=-1, keepdims=True)
        e = jnp.exp(s - m)
        p = e * pl.reciprocal(jnp.sum(e, axis=-1, keepdims=True), approx=True)
        heads.append(jnp.dot(p, v_all[:, lo:hi],
                             preferred_element_type=jnp.float32))
    attn_cat = jnp.concatenate(heads, axis=-1)    # (Nq, H*Dh)
    return jnp.dot(attn_cat, woc, preferred_element_type=jnp.float32) + boc


# ---------------------------------------------------------------------------
# Pallas kernel: full decoder layer for ONE batch element
# ---------------------------------------------------------------------------
def decoder_layer_kernel(x_ref, enc_ref, w_ref, v_ref, out_ref):
    E, I = HIDDEN, INTERMEDIATE
    x = x_ref[...]          # (S,  E)
    enc = enc_ref[...]      # (Se, E)

    # --- weight slab: one 32-row block per matrix, lane offset 0 ------------
    W_sqkv = w_ref[0 * E:1 * E, 0:3 * E]   # (E, 3E) self fused QKV (Q scaled)
    WoC_s  = w_ref[1 * E:2 * E, 0:E]       # (E, E)  self folded Wo@Wc
    W_cq   = w_ref[2 * E:3 * E, 0:E]       # (E, E)  cross Q (scaled)
    W_ckv  = w_ref[3 * E:4 * E, 0:2 * E]   # (E, 2E) cross fused KV
    WoC_c  = w_ref[4 * E:5 * E, 0:E]       # (E, E)  cross folded Wo@Wc
    fW1    = w_ref[5 * E:6 * E, 0:I]       # (E, I)
    fW2T   = w_ref[6 * E:7 * E, 0:I]       # (E, I)  = fW2.T

    # --- bias / LayerNorm slab: one vector per row, lane offset 0 -----------
    s_bqkv = v_ref[0:1, 0:3 * E]
    s_boC  = v_ref[1:2, 0:E]
    c_bq   = v_ref[2:3, 0:E]
    c_bkv  = v_ref[3:4, 0:2 * E]
    c_boC  = v_ref[4:5, 0:E]
    f_b1   = v_ref[5:6, 0:I]
    f_b2   = v_ref[6:7, 0:E]
    ln1_w  = v_ref[7:8, 0:E]
    ln1_b  = v_ref[8:9, 0:E]
    ln2_w  = v_ref[9:10, 0:E]
    ln2_b  = v_ref[10:11, 0:E]

    # ---- x + self_attention(LN1(x), LN1(x), LN1(x)) -------------------------
    h1 = _layernorm(x, ln1_w, ln1_b)
    sqkv = jnp.dot(h1, W_sqkv, preferred_element_type=jnp.float32) + s_bqkv
    y1 = x + _mha(sqkv[:, 0:E], sqkv[:, E:2 * E], sqkv[:, 2 * E:3 * E],
                  WoC_s, s_boC)

    # ---- y1 + cross_attention(y1, enc, enc)  (no LN before cross-attn) ------
    cq = jnp.dot(y1, W_cq, preferred_element_type=jnp.float32) + c_bq
    ckv = jnp.dot(enc, W_ckv, preferred_element_type=jnp.float32) + c_bkv
    y2 = y1 + _mha(cq, ckv[:, 0:E], ckv[:, E:2 * E], WoC_c, c_boC)

    # ---- y2 + FeedForward(LN2(y2)) ------------------------------------------
    h2 = _layernorm(y2, ln2_w, ln2_b)
    ff = jnp.dot(h2, fW1, preferred_element_type=jnp.float32) + f_b1
    ff = jax.nn.gelu(ff, approximate=True)
    ff = lax.dot_general(ff, fW2T, (((1,), (1,)), ((), ())),
                         preferred_element_type=jnp.float32) + f_b2
    out_ref[...] = (y2 + ff).astype(out_ref.dtype)


# ---------------------------------------------------------------------------
# wrapper: batch grid, one batch element per (parallel) grid step
# ---------------------------------------------------------------------------
def transformer_decoder_layer(x, enc, packed):
    w_slab, vec_slab = packed
    B, S, E = x.shape
    _, Se, _ = enc.shape
    return pl.pallas_call(
        decoder_layer_kernel,
        out_shape=jax.ShapeDtypeStruct((B, S, E), x.dtype),
        grid=(B,),
        in_specs=[
            pl.BlockSpec((None, S, E), lambda b: (b, 0, 0)),
            pl.BlockSpec((None, Se, E), lambda b: (b, 0, 0)),
            pl.BlockSpec(w_slab.shape, lambda b: (0, 0)),
            pl.BlockSpec(vec_slab.shape, lambda b: (0, 0)),
        ],
        out_specs=pl.BlockSpec((None, S, E), lambda b: (b, 0, 0)),
        compiler_params=pltpu.CompilerParams(
            dimension_semantics=("parallel",)),
    )(x, enc, w_slab, vec_slab)


# ---------------------------------------------------------------------------
# parameter init (per-head stacked, (in, out) layout -- matches the PyTorch
# module structure: per-head q/k/v/output_linear + per-MHA output_linear)
# ---------------------------------------------------------------------------
def _make_mha_params(key, scale=0.05):
    ks = jax.random.split(key, 10)
    n = lambda k, s: scale * jax.random.normal(k, s, jnp.float32)
    Wq = n(ks[0], (NUM_HEADS, HIDDEN, HEAD_DIM)); bq = n(ks[1], (NUM_HEADS, HEAD_DIM))
    Wk = n(ks[2], (NUM_HEADS, HIDDEN, HEAD_DIM)); bk = n(ks[3], (NUM_HEADS, HEAD_DIM))
    Wv = n(ks[4], (NUM_HEADS, HIDDEN, HEAD_DIM)); bv = n(ks[5], (NUM_HEADS, HEAD_DIM))
    Wo = n(ks[6], (NUM_HEADS, HEAD_DIM, HIDDEN)); bo = n(ks[7], (NUM_HEADS, HIDDEN))
    Wc = n(ks[8], (NUM_HEADS, HIDDEN, HIDDEN));   bc = n(ks[9], (1, HIDDEN))
    return [Wq, bq, Wk, bk, Wv, bv, Wo, bo, Wc, bc]


def init_params(key):
    k_ln, k_sa, k_ca, k_ff = jax.random.split(key, 4)
    kl = jax.random.split(k_ln, 4)
    ln1_w = 1.0 + 0.05 * jax.random.normal(kl[0], (1, HIDDEN), jnp.float32)
    ln1_b = 0.05 * jax.random.normal(kl[1], (1, HIDDEN), jnp.float32)
    ln2_w = 1.0 + 0.05 * jax.random.normal(kl[2], (1, HIDDEN), jnp.float32)
    ln2_b = 0.05 * jax.random.normal(kl[3], (1, HIDDEN), jnp.float32)
    kf = jax.random.split(k_ff, 4)
    fW1 = 0.05 * jax.random.normal(kf[0], (HIDDEN, INTERMEDIATE), jnp.float32)
    fb1 = 0.05 * jax.random.normal(kf[1], (1, INTERMEDIATE), jnp.float32)
    fW2 = 0.05 * jax.random.normal(kf[2], (INTERMEDIATE, HIDDEN), jnp.float32)
    fb2 = 0.05 * jax.random.normal(kf[3], (1, HIDDEN), jnp.float32)
    return ([ln1_w, ln1_b, ln2_w, ln2_b]
            + _make_mha_params(k_sa)
            + _make_mha_params(k_ca)
            + [fW1, fb1, fW2, fb2])


# ---------------------------------------------------------------------------
# host-side packing: fold Wo@Wc, fold softmax scale into Q, fuse per-head QKV,
# build sublane-major slabs (one 32-row / one-row block per tensor, lane 0)
# ---------------------------------------------------------------------------
def pack_params(params):
    ln1_w, ln1_b, ln2_w, ln2_b = params[:4]
    sp, cp = params[4:14], params[14:24]
    fW1, fb1, fW2, fb2 = params[24:]

    def fold_attn(p):
        Wq, bq, Wk, bk, Wv, bv, Wo, bo, Wc, bc = p
        to_all = lambda w: jnp.transpose(w, (1, 0, 2)).reshape(
            HIDDEN, NUM_HEADS * HEAD_DIM)
        Wq_all = to_all(Wq) * INV_SQRT_HD          # fold 1/sqrt(head_dim)
        Wk_all, Wv_all = to_all(Wk), to_all(Wv)
        bq_all = bq.reshape(-1) * INV_SQRT_HD
        bk_all, bv_all = bk.reshape(-1), bv.reshape(-1)
        WoC = jnp.einsum('hdk,hke->hde', Wo, Wc).reshape(
            NUM_HEADS * HEAD_DIM, HIDDEN)
        boC = jnp.einsum('hk,hke->e', bo, Wc) + bc[0]
        return Wq_all, Wk_all, Wv_all, bq_all, bk_all, bv_all, WoC, boC

    sWq, sWk, sWv, sbq, sbk, sbv, sWoC, sboC = fold_attn(sp)
    cWq, cWk, cWv, cbq, cbk, cbv, cWoC, cboC = fold_attn(cp)

    def pad_lanes(m):
        return jnp.pad(m, ((0, 0), (0, 128 - m.shape[1])))

    w_blocks = [
        jnp.concatenate([sWq, sWk, sWv], axis=1),   # (E, 3E)  self QKV
        sWoC,                                       # (E, E)
        cWq,                                        # (E, E)
        jnp.concatenate([cWk, cWv], axis=1),        # (E, 2E)  cross KV
        cWoC,                                       # (E, E)
        fW1,                                        # (E, I)
        fW2.T,                                      # (E, I)   pre-transposed
    ]
    w_slab = jnp.concatenate([pad_lanes(b) for b in w_blocks],
                             axis=0).astype(jnp.float32)      # (224, 128)

    def row(v):
        v = v.reshape(-1)
        return jnp.pad(v, (0, 128 - v.shape[0]))[None, :]

    vec_rows = [
        row(jnp.concatenate([sbq, sbk, sbv])),   # 0: self b_qkv (bq scaled)
        row(sboC),                               # 1
        row(cbq),                                # 2: cross b_q (scaled)
        row(jnp.concatenate([cbk, cbv])),        # 3
        row(cboC),                               # 4
        row(fb1),                                # 5
        row(fb2),                                # 6
        row(ln1_w),                              # 7
        row(ln1_b),                              # 8
        row(ln2_w),                              # 9
        row(ln2_b),                              # 10
    ]
    vec_slab = jnp.concatenate(
        vec_rows + [jnp.zeros((16 - len(vec_rows), 128), jnp.float32)],
        axis=0).astype(jnp.float32)                           # (16, 128)
    return w_slab, vec_slab


# ---------------------------------------------------------------------------
# pure-JAX reference (faithful per-head concat form, original params)
# ---------------------------------------------------------------------------
def _ref_mha(q_in, k_in, v_in, p):
    Wq, bq, Wk, bk, Wv, bv, Wo, bo, Wc, bc = p
    outs = []
    for h in range(NUM_HEADS):
        q = q_in @ Wq[h] + bq[h]
        k = k_in @ Wk[h] + bk[h]
        v = v_in @ Wv[h] + bv[h]
        s = (q @ k.T) / sqrt(HEAD_DIM)
        w = jax.nn.softmax(s, axis=-1)
        w = jnp.nan_to_num(w)
        outs.append((w @ v) @ Wo[h] + bo[h])
    xcat = jnp.concatenate(outs, axis=-1)
    return xcat @ Wc.reshape(NUM_HEADS * HIDDEN, HIDDEN) + bc[0]


def _ref_layer(x, enc, params):
    ln1_w, ln1_b, ln2_w, ln2_b = params[:4]
    sp, cp = params[4:14], params[14:24]
    fW1, fb1, fW2, fb2 = params[24:]
    h1 = _layernorm(x, ln1_w[0], ln1_b[0])
    y1 = x + _ref_mha(h1, h1, h1, sp)
    y2 = y1 + _ref_mha(y1, enc, enc, cp)
    h2 = _layernorm(y2, ln2_w[0], ln2_b[0])
    ff = jax.nn.gelu(h2 @ fW1 + fb1[0], approximate=True) @ fW2 + fb2[0]
    return y2 + ff


if __name__ == "__main__":
    key = jax.random.PRNGKey(0)
    kx, ke, kp = jax.random.split(key, 3)
    B, S, Se = 2, 8, 8
    x = jax.random.normal(kx, (B, S, HIDDEN), jnp.float32)
    enc = jax.random.normal(ke, (B, Se, HIDDEN), jnp.float32)
    params = init_params(kp)
    packed = pack_params(params)

    out = transformer_decoder_layer(x, enc, packed)
    jax.block_until_ready(out)

    ref = jax.vmap(lambda xb, eb: _ref_layer(xb, eb, params))(x, enc)
    assert out.shape == (B, S, HIDDEN)
    err = float(jnp.max(jnp.abs(out - ref)))
    if err > 2e-2:
        raise AssertionError(f"kernel/reference mismatch, max abs err = {err}")
    print("KERNEL_OK")
</pallas_src>

<mosaic_0001>
module attributes {stable_mosaic.version = 11 : i64} {
  func.func @decoder_layer_kernel(%arg0: i32, %arg1: memref<1x8x32xf32, #tpu.memory_space<vmem>>, %arg2: memref<1x8x32xf32, #tpu.memory_space<vmem>>, %arg3: memref<224x128xf32, #tpu.memory_space<vmem>>, %arg4: memref<16x128xf32, #tpu.memory_space<vmem>>, %arg5: memref<1x8x32xf32, #tpu.memory_space<vmem>>) attributes {dimension_semantics = [#tpu.dimension_semantics<parallel>], iteration_bounds = array<i64: 2>, scalar_prefetch = 0 : i64, scratch_operands = 0 : i64, tpu.core_type = #tpu.core_type<tc>, window_params = [{transform_indices = @transform_0, window_bounds = array<i64: 1, 8, 32>}, {transform_indices = @transform_1, window_bounds = array<i64: 1, 8, 32>}, {pipeline_mode = #tpu.pipeline_mode<synchronous>, transform_indices = @transform_2, window_bounds = array<i64: 224, 128>}, {pipeline_mode = #tpu.pipeline_mode<synchronous>, transform_indices = @transform_3, window_bounds = array<i64: 16, 128>}, {transform_indices = @transform_4, window_bounds = array<i64: 1, 8, 32>}]} {
    %c0 = arith.constant 0 : index
    %c0_0 = arith.constant 0 : index
    %c0_1 = arith.constant 0 : index
    %0 = vector.load %arg1[%c0, %c0_0, %c0_1] : memref<1x8x32xf32, #tpu.memory_space<vmem>>, vector<1x8x32xf32>
    %1 = vector.shape_cast %0 : vector<1x8x32xf32> to vector<8x32xf32>
    %c0_2 = arith.constant 0 : index
    %c0_3 = arith.constant 0 : index
    %c0_4 = arith.constant 0 : index
    %2 = vector.load %arg2[%c0_2, %c0_3, %c0_4] : memref<1x8x32xf32, #tpu.memory_space<vmem>>, vector<1x8x32xf32>
    %3 = vector.shape_cast %2 : vector<1x8x32xf32> to vector<8x32xf32>
    %c0_5 = arith.constant 0 : index
    %c0_6 = arith.constant 0 : index
    %4 = vector.load %arg3[%c0_5, %c0_6] : memref<224x128xf32, #tpu.memory_space<vmem>>, vector<32x96xf32>
    %c32 = arith.constant 32 : index
    %c0_7 = arith.constant 0 : index
    %5 = vector.load %arg3[%c32, %c0_7] : memref<224x128xf32, #tpu.memory_space<vmem>>, vector<32x32xf32>
    %c64 = arith.constant 64 : index
    %c0_8 = arith.constant 0 : index
    %6 = vector.load %arg3[%c64, %c0_8] : memref<224x128xf32, #tpu.memory_space<vmem>>, vector<32x32xf32>
    %c96 = arith.constant 96 : index
    %c0_9 = arith.constant 0 : index
    %7 = vector.load %arg3[%c96, %c0_9] : memref<224x128xf32, #tpu.memory_space<vmem>>, vector<32x64xf32>
    %c128 = arith.constant 128 : index
    %c0_10 = arith.constant 0 : index
    %8 = vector.load %arg3[%c128, %c0_10] : memref<224x128xf32, #tpu.memory_space<vmem>>, vector<32x32xf32>
    %c160 = arith.constant 160 : index
    %c0_11 = arith.constant 0 : index
    %9 = vector.load %arg3[%c160, %c0_11] : memref<224x128xf32, #tpu.memory_space<vmem>>, vector<32x64xf32>
    %c192 = arith.constant 192 : index
    %c0_12 = arith.constant 0 : index
    %10 = vector.load %arg3[%c192, %c0_12] : memref<224x128xf32, #tpu.memory_space<vmem>>, vector<32x64xf32>
    %c0_13 = arith.constant 0 : index
    %c0_14 = arith.constant 0 : index
    %11 = vector.load %arg4[%c0_13, %c0_14] : memref<16x128xf32, #tpu.memory_space<vmem>>, vector<1x96xf32>
    %c1 = arith.constant 1 : index
    %c0_15 = arith.constant 0 : index
    %12 = vector.load %arg4[%c1, %c0_15] : memref<16x128xf32, #tpu.memory_space<vmem>>, vector<1x32xf32>
    %c2 = arith.constant 2 : index
    %c0_16 = arith.constant 0 : index
    %13 = vector.load %arg4[%c2, %c0_16] : memref<16x128xf32, #tpu.memory_space<vmem>>, vector<1x32xf32>
    %c3 = arith.constant 3 : index
    %c0_17 = arith.constant 0 : index
    %14 = vector.load %arg4[%c3, %c0_17] : memref<16x128xf32, #tpu.memory_space<vmem>>, vector<1x64xf32>
    %c4 = arith.constant 4 : index
    %c0_18 = arith.constant 0 : index
    %15 = vector.load %arg4[%c4, %c0_18] : memref<16x128xf32, #tpu.memory_space<vmem>>, vector<1x32xf32>
    %c5 = arith.constant 5 : index
    %c0_19 = arith.constant 0 : index
    %16 = vector.load %arg4[%c5, %c0_19] : memref<16x128xf32, #tpu.memory_space<vmem>>, vector<1x64xf32>
    %c6 = arith.constant 6 : index
    %c0_20 = arith.constant 0 : index
    %17 = vector.load %arg4[%c6, %c0_20] : memref<16x128xf32, #tpu.memory_space<vmem>>, vector<1x32xf32>
    %c7 = arith.constant 7 : index
    %c0_21 = arith.constant 0 : index
    %18 = vector.load %arg4[%c7, %c0_21] : memref<16x128xf32, #tpu.memory_space<vmem>>, vector<1x32xf32>
    %c8 = arith.constant 8 : index
    %c0_22 = arith.constant 0 : index
    %19 = vector.load %arg4[%c8, %c0_22] : memref<16x128xf32, #tpu.memory_space<vmem>>, vector<1x32xf32>
    %c9 = arith.constant 9 : index
    %c0_23 = arith.constant 0 : index
    %20 = vector.load %arg4[%c9, %c0_23] : memref<16x128xf32, #tpu.memory_space<vmem>>, vector<1x32xf32>
    %c10 = arith.constant 10 : index
    %c0_24 = arith.constant 0 : index
    %21 = vector.load %arg4[%c10, %c0_24] : memref<16x128xf32, #tpu.memory_space<vmem>>, vector<1x32xf32>
    %cst = arith.constant dense<0.000000e+00> : vector<8xf32>
    %22 = vector.multi_reduction <add>, %1, %cst [1] : vector<8x32xf32> to vector<8xf32>
    %23 = vector.shape_cast %22 : vector<8xf32> to vector<8x1xf32>
    %cst_25 = arith.constant 3.200000e+01 : f32
    %24 = vector.broadcast %cst_25 : f32 to vector<8x1xf32>
    %25 = arith.divf %23, %24 : vector<8x1xf32>
    %26 = vector.broadcast %25 : vector<8x1xf32> to vector<8x32xf32>
    %27 = arith.subf %1, %26 : vector<8x32xf32>
    %28 = arith.mulf %27, %27 : vector<8x32xf32>
    %cst_26 = arith.constant dense<0.000000e+00> : vector<8xf32>
    %29 = vector.multi_reduction <add>, %28, %cst_26 [1] : vector<8x32xf32> to vector<8xf32>
    %30 = vector.shape_cast %29 : vector<8xf32> to vector<8x1xf32>
    %cst_27 = arith.constant 3.200000e+01 : f32
    %31 = vector.broadcast %cst_27 : f32 to vector<8x1xf32>
    %32 = arith.divf %30, %31 : vector<8x1xf32>
    %33 = vector.broadcast %25 : vector<8x1xf32> to vector<8x32xf32>
    %34 = arith.subf %1, %33 : vector<8x32xf32>
    %cst_28 = arith.constant 9.99999974E-6 : f32
    %35 = vector.broadcast %cst_28 : f32 to vector<8x1xf32>
    %36 = arith.addf %32, %35 : vector<8x1xf32>
    %37 = math.rsqrt %36 : vector<8x1xf32>
    %38 = vector.broadcast %37 : vector<8x1xf32> to vector<8x32xf32>
    %39 = arith.mulf %34, %38 : vector<8x32xf32>
    %40 = vector.broadcast %18 : vector<1x32xf32> to vector<8x32xf32>
    %41 = arith.mulf %39, %40 : vector<8x32xf32>
    %42 = vector.broadcast %19 : vector<1x32xf32> to vector<8x32xf32>
    %43 = arith.addf %41, %42 : vector<8x32xf32>
    %cst_29 = arith.constant dense<0.000000e+00> : vector<8x96xf32>
    %44 = tpu.matmul %43, %4, %cst_29 {dimension_numbers = #tpu.dot_dimension_numbers<[1], [0], [0], [1], [0, 0, 1, 1], [], []>} : vector<8x32xf32>, vector<32x96xf32>, vector<8x96xf32> -> vector<8x96xf32>
    %45 = vector.broadcast %11 : vector<1x96xf32> to vector<8x96xf32>
    %46 = arith.addf %44, %45 : vector<8x96xf32>
    %47 = vector.extract_strided_slice %46 {offsets = [0, 0], sizes = [8, 32], strides = [1, 1]} : vector<8x96xf32> to vector<8x32xf32>
    %48 = vector.extract_strided_slice %46 {offsets = [0, 32], sizes = [8, 32], strides = [1, 1]} : vector<8x96xf32> to vector<8x32xf32>
    %49 = vector.extract_strided_slice %46 {offsets = [0, 64], sizes = [8, 32], strides = [1, 1]} : vector<8x96xf32> to vector<8x32xf32>
    %50 = vector.extract_strided_slice %47 {offsets = [0, 0], sizes = [8, 8], strides = [1, 1]} : vector<8x32xf32> to vector<8x8xf32>
    %51 = vector.extract_strided_slice %48 {offsets = [0, 0], sizes = [8, 8], strides = [1, 1]} : vector<8x32xf32> to vector<8x8xf32>
    %cst_30 = arith.constant dense<0.000000e+00> : vector<8x8xf32>
    %52 = tpu.matmul %50, %51, %cst_30 {dimension_numbers = #tpu.dot_dimension_numbers<[1], [1], [0], [0], [0, 0, 1, 0], [], []>} : vector<8x8xf32>, vector<8x8xf32>, vector<8x8xf32> -> vector<8x8xf32>
    %cst_31 = arith.constant dense<0xFF800000> : vector<8xf32>
    %53 = vector.multi_reduction <maximumf>, %52, %cst_31 [1] : vector<8x8xf32> to vector<8xf32>
    %54 = vector.shape_cast %53 : vector<8xf32> to vector<8x1xf32>
    %55 = vector.broadcast %54 : vector<8x1xf32> to vector<8x8xf32>
    %56 = arith.subf %52, %55 : vector<8x8xf32>
    %57 = math.exp %56 : vector<8x8xf32>
    %cst_32 = arith.constant dense<0.000000e+00> : vector<8xf32>
    %58 = vector.multi_reduction <add>, %57, %cst_32 [1] : vector<8x8xf32> to vector<8xf32>
    %59 = vector.shape_cast %58 : vector<8xf32> to vector<8x1xf32>
    %60 = tpu.reciprocal %59 {approx = true} : vector<8x1xf32> -> vector<8x1xf32>
    %61 = vector.broadcast %60 : vector<8x1xf32> to vector<8x8xf32>
    %62 = arith.mulf %57, %61 : vector<8x8xf32>
    %63 = vector.extract_strided_slice %49 {offsets = [0, 0], sizes = [8, 8], strides = [1, 1]} : vector<8x32xf32> to vector<8x8xf32>
    %cst_33 = arith.constant dense<0.000000e+00> : vector<8x8xf32>
    %64 = tpu.matmul %62, %63, %cst_33 {dimension_numbers = #tpu.dot_dimension_numbers<[1], [0], [0], [1], [0, 0, 1, 1], [], []>} : vector<8x8xf32>, vector<8x8xf32>, vector<8x8xf32> -> vector<8x8xf32>
    %65 = vector.extract_strided_slice %47 {offsets = [0, 8], sizes = [8, 8], strides = [1, 1]} : vector<8x32xf32> to vector<8x8xf32>
    %66 = vector.extract_strided_slice %48 {offsets = [0, 8], sizes = [8, 8], strides = [1, 1]} : vector<8x32xf32> to vector<8x8xf32>
    %cst_34 = arith.constant dense<0.000000e+00> : vector<8x8xf32>
    %67 = tpu.matmul %65, %66, %cst_34 {dimension_numbers = #tpu.dot_dimension_numbers<[1], [1], [0], [0], [0, 0, 1, 0], [], []>} : vector<8x8xf32>, vector<8x8xf32>, vector<8x8xf32> -> vector<8x8xf32>
    %cst_35 = arith.constant dense<0xFF800000> : vector<8xf32>
    %68 = vector.multi_reduction <maximumf>, %67, %cst_35 [1] : vector<8x8xf32> to vector<8xf32>
    %69 = vector.shape_cast %68 : vector<8xf32> to vector<8x1xf32>
    %70 = vector.broadcast %69 : vector<8x1xf32> to vector<8x8xf32>
    %71 = arith.subf %67, %70 : vector<8x8xf32>
    %72 = math.exp %71 : vector<8x8xf32>
    %cst_36 = arith.constant dense<0.000000e+00> : vector<8xf32>
    %73 = vector.multi_reduction <add>, %72, %cst_36 [1] : vector<8x8xf32> to vector<8xf32>
    %74 = vector.shape_cast %73 : vector<8xf32> to vector<8x1xf32>
    %75 = tpu.reciprocal %74 {approx = true} : vector<8x1xf32> -> vector<8x1xf32>
    %76 = vector.broadcast %75 : vector<8x1xf32> to vector<8x8xf32>
    %77 = arith.mulf %72, %76 : vector<8x8xf32>
    %78 = vector.extract_strided_slice %49 {offsets = [0, 8], sizes = [8, 8], strides = [1, 1]} : vector<8x32xf32> to vector<8x8xf32>
    %cst_37 = arith.constant dense<0.000000e+00> : vector<8x8xf32>
    %79 = tpu.matmul %77, %78, %cst_37 {dimension_numbers = #tpu.dot_dimension_numbers<[1], [0], [0], [1], [0, 0, 1, 1], [], []>} : vector<8x8xf32>, vector<8x8xf32>, vector<8x8xf32> -> vector<8x8xf32>
    %80 = vector.extract_strided_slice %47 {offsets = [0, 16], sizes = [8, 8], strides = [1, 1]} : vector<8x32xf32> to vector<8x8xf32>
    %81 = vector.extract_strided_slice %48 {offsets = [0, 16], sizes = [8, 8], strides = [1, 1]} : vector<8x32xf32> to vector<8x8xf32>
    %cst_38 = arith.constant dense<0.000000e+00> : vector<8x8xf32>
    %82 = tpu.matmul %80, %81, %cst_38 {dimension_numbers = #tpu.dot_dimension_numbers<[1], [1], [0], [0], [0, 0, 1, 0], [], []>} : vector<8x8xf32>, vector<8x8xf32>, vector<8x8xf32> -> vector<8x8xf32>
    %cst_39 = arith.constant dense<0xFF800000> : vector<8xf32>
    %83 = vector.multi_reduction <maximumf>, %82, %cst_39 [1] : vector<8x8xf32> to vector<8xf32>
    %84 = vector.shape_cast %83 : vector<8xf32> to vector<8x1xf32>
    %85 = vector.broadcast %84 : vector<8x1xf32> to vector<8x8xf32>
    %86 = arith.subf %82, %85 : vector<8x8xf32>
    %87 = math.exp %86 : vector<8x8xf32>
    %cst_40 = arith.constant dense<0.000000e+00> : vector<8xf32>
    %88 = vector.multi_reduction <add>, %87, %cst_40 [1] : vector<8x8xf32> to vector<8xf32>
    %89 = vector.shape_cast %88 : vector<8xf32> to vector<8x1xf32>
    %90 = tpu.reciprocal %89 {approx = true} : vector<8x1xf32> -> vector<8x1xf32>
    %91 = vector.broadcast %90 : vector<8x1xf32> to vector<8x8xf32>
    %92 = arith.mulf %87, %91 : vector<8x8xf32>
    %93 = vector.extract_strided_slice %49 {offsets = [0, 16], sizes = [8, 8], strides = [1, 1]} : vector<8x32xf32> to vector<8x8xf32>
    %cst_41 = arith.constant dense<0.000000e+00> : vector<8x8xf32>
    %94 = tpu.matmul %92, %93, %cst_41 {dimension_numbers = #tpu.dot_dimension_numbers<[1], [0], [0], [1], [0, 0, 1, 1], [], []>} : vector<8x8xf32>, vector<8x8xf32>, vector<8x8xf32> -> vector<8x8xf32>
    %95 = vector.extract_strided_slice %47 {offsets = [0, 24], sizes = [8, 8], strides = [1, 1]} : vector<8x32xf32> to vector<8x8xf32>
    %96 = vector.extract_strided_slice %48 {offsets = [0, 24], sizes = [8, 8], strides = [1, 1]} : vector<8x32xf32> to vector<8x8xf32>
    %cst_42 = arith.constant dense<0.000000e+00> : vector<8x8xf32>
    %97 = tpu.matmul %95, %96, %cst_42 {dimension_numbers = #tpu.dot_dimension_numbers<[1], [1], [0], [0], [0, 0, 1, 0], [], []>} : vector<8x8xf32>, vector<8x8xf32>, vector<8x8xf32> -> vector<8x8xf32>
    %cst_43 = arith.constant dense<0xFF800000> : vector<8xf32>
    %98 = vector.multi_reduction <maximumf>, %97, %cst_43 [1] : vector<8x8xf32> to vector<8xf32>
    %99 = vector.shape_cast %98 : vector<8xf32> to vector<8x1xf32>
    %100 = vector.broadcast %99 : vector<8x1xf32> to vector<8x8xf32>
    %101 = arith.subf %97, %100 : vector<8x8xf32>
    %102 = math.exp %101 : vector<8x8xf32>
    %cst_44 = arith.constant dense<0.000000e+00> : vector<8xf32>
    %103 = vector.multi_reduction <add>, %102, %cst_44 [1] : vector<8x8xf32> to vector<8xf32>
    %104 = vector.shape_cast %103 : vector<8xf32> to vector<8x1xf32>
    %105 = tpu.reciprocal %104 {approx = true} : vector<8x1xf32> -> vector<8x1xf32>
    %106 = vector.broadcast %105 : vector<8x1xf32> to vector<8x8xf32>
    %107 = arith.mulf %102, %106 : vector<8x8xf32>
    %108 = vector.extract_strided_slice %49 {offsets = [0, 24], sizes = [8, 8], strides = [1, 1]} : vector<8x32xf32> to vector<8x8xf32>
    %cst_45 = arith.constant dense<0.000000e+00> : vector<8x8xf32>
    %109 = tpu.matmul %107, %108, %cst_45 {dimension_numbers = #tpu.dot_dimension_numbers<[1], [0], [0], [1], [0, 0, 1, 1], [], []>} : vector<8x8xf32>, vector<8x8xf32>, vector<8x8xf32> -> vector<8x8xf32>
    %110 = tpu.concatenate %64, %79, %94, %109 in 1 : vector<8x8xf32>, vector<8x8xf32>, vector<8x8xf32>, vector<8x8xf32> -> vector<8x32xf32>
    %cst_46 = arith.constant dense<0.000000e+00> : vector<8x32xf32>
    %111 = tpu.matmul %110, %5, %cst_46 {dimension_numbers = #tpu.dot_dimension_numbers<[1], [0], [0], [1], [0, 0, 1, 1], [], []>} : vector<8x32xf32>, vector<32x32xf32>, vector<8x32xf32> -> vector<8x32xf32>
    %112 = vector.broadcast %12 : vector<1x32xf32> to vector<8x32xf32>
    %113 = arith.addf %111, %112 : vector<8x32xf32>
    %114 = arith.addf %1, %113 : vector<8x32xf32>
    %cst_47 = arith.constant dense<0.000000e+00> : vector<8x32xf32>
    %115 = tpu.matmul %114, %6, %cst_47 {dimension_numbers = #tpu.dot_dimension_numbers<[1], [0], [0], [1], [0, 0, 1, 1], [], []>} : vector<8x32xf32>, vector<32x32xf32>, vector<8x32xf32> -> vector<8x32xf32>
    %116 = vector.broadcast %13 : vector<1x32xf32> to vector<8x32xf32>
    %117 = arith.addf %115, %116 : vector<8x32xf32>
    %cst_48 = arith.constant dense<0.000000e+00> : vector<8x64xf32>
    %118 = tpu.matmul %3, %7, %cst_48 {dimension_numbers = #tpu.dot_dimension_numbers<[1], [0], [0], [1], [0, 0, 1, 1], [], []>} : vector<8x32xf32>, vector<32x64xf32>, vector<8x64xf32> -> vector<8x64xf32>
    %119 = vector.broadcast %14 : vector<1x64xf32> to vector<8x64xf32>
    %120 = arith.addf %118, %119 : vector<8x64xf32>
    %121 = vector.extract_strided_slice %120 {offsets = [0, 0], sizes = [8, 32], strides = [1, 1]} : vector<8x64xf32> to vector<8x32xf32>
    %122 = vector.extract_strided_slice %120 {offsets = [0, 32], sizes = [8, 32], strides = [1, 1]} : vector<8x64xf32> to vector<8x32xf32>
    %123 = vector.extract_strided_slice %117 {offsets = [0, 0], sizes = [8, 8], strides = [1, 1]} : vector<8x32xf32> to vector<8x8xf32>
    %124 = vector.extract_strided_slice %121 {offsets = [0, 0], sizes = [8, 8], strides = [1, 1]} : vector<8x32xf32> to vector<8x8xf32>
    %cst_49 = arith.constant dense<0.000000e+00> : vector<8x8xf32>
    %125 = tpu.matmul %123, %124, %cst_49 {dimension_numbers = #tpu.dot_dimension_numbers<[1], [1], [0], [0], [0, 0, 1, 0], [], []>} : vector<8x8xf32>, vector<8x8xf32>, vector<8x8xf32> -> vector<8x8xf32>
    %cst_50 = arith.constant dense<0xFF800000> : vector<8xf32>
    %126 = vector.multi_reduction <maximumf>, %125, %cst_50 [1] : vector<8x8xf32> to vector<8xf32>
    %127 = vector.shape_cast %126 : vector<8xf32> to vector<8x1xf32>
    %128 = vector.broadcast %127 : vector<8x1xf32> to vector<8x8xf32>
    %129 = arith.subf %125, %128 : vector<8x8xf32>
    %130 = math.exp %129 : vector<8x8xf32>
    %cst_51 = arith.constant dense<0.000000e+00> : vector<8xf32>
    %131 = vector.multi_reduction <add>, %130, %cst_51 [1] : vector<8x8xf32> to vector<8xf32>
    %132 = vector.shape_cast %131 : vector<8xf32> to vector<8x1xf32>
    %133 = tpu.reciprocal %132 {approx = true} : vector<8x1xf32> -> vector<8x1xf32>
    %134 = vector.broadcast %133 : vector<8x1xf32> to vector<8x8xf32>
    %135 = arith.mulf %130, %134 : vector<8x8xf32>
    %136 = vector.extract_strided_slice %122 {offsets = [0, 0], sizes = [8, 8], strides = [1, 1]} : vector<8x32xf32> to vector<8x8xf32>
    %cst_52 = arith.constant dense<0.000000e+00> : vector<8x8xf32>
    %137 = tpu.matmul %135, %136, %cst_52 {dimension_numbers = #tpu.dot_dimension_numbers<[1], [0], [0], [1], [0, 0, 1, 1], [], []>} : vector<8x8xf32>, vector<8x8xf32>, vector<8x8xf32> -> vector<8x8xf32>
    %138 = vector.extract_strided_slice %117 {offsets = [0, 8], sizes = [8, 8], strides = [1, 1]} : vector<8x32xf32> to vector<8x8xf32>
    %139 = vector.extract_strided_slice %121 {offsets = [0, 8], sizes = [8, 8], strides = [1, 1]} : vector<8x32xf32> to vector<8x8xf32>
    %cst_53 = arith.constant dense<0.000000e+00> : vector<8x8xf32>
    %140 = tpu.matmul %138, %139, %cst_53 {dimension_numbers = #tpu.dot_dimension_numbers<[1], [1], [0], [0], [0, 0, 1, 0], [], []>} : vector<8x8xf32>, vector<8x8xf32>, vector<8x8xf32> -> vector<8x8xf32>
    %cst_54 = arith.constant dense<0xFF800000> : vector<8xf32>
    %141 = vector.multi_reduction <maximumf>, %140, %cst_54 [1] : vector<8x8xf32> to vector<8xf32>
    %142 = vector.shape_cast %141 : vector<8xf32> to vector<8x1xf32>
    %143 = vector.broadcast %142 : vector<8x1xf32> to vector<8x8xf32>
    %144 = arith.subf %140, %143 : vector<8x8xf32>
    %145 = math.exp %144 : vector<8x8xf32>
    %cst_55 = arith.constant dense<0.000000e+00> : vector<8xf32>
    %146 = vector.multi_reduction <add>, %145, %cst_55 [1] : vector<8x8xf32> to vector<8xf32>
    %147 = vector.shape_cast %146 : vector<8xf32> to vector<8x1xf32>
    %148 = tpu.reciprocal %147 {approx = true} : vector<8x1xf32> -> vector<8x1xf32>
    %149 = vector.broadcast %148 : vector<8x1xf32> to vector<8x8xf32>
    %150 = arith.mulf %145, %149 : vector<8x8xf32>
    %151 = vector.extract_strided_slice %122 {offsets = [0, 8], sizes = [8, 8], strides = [1, 1]} : vector<8x32xf32> to vector<8x8xf32>
    %cst_56 = arith.constant dense<0.000000e+00> : vector<8x8xf32>
    %152 = tpu.matmul %150, %151, %cst_56 {dimension_numbers = #tpu.dot_dimension_numbers<[1], [0], [0], [1], [0, 0, 1, 1], [], []>} : vector<8x8xf32>, vector<8x8xf32>, vector<8x8xf32> -> vector<8x8xf32>
    %153 = vector.extract_strided_slice %117 {offsets = [0, 16], sizes = [8, 8], strides = [1, 1]} : vector<8x32xf32> to vector<8x8xf32>
    %154 = vector.extract_strided_slice %121 {offsets = [0, 16], sizes = [8, 8], strides = [1, 1]} : vector<8x32xf32> to vector<8x8xf32>
    %cst_57 = arith.constant dense<0.000000e+00> : vector<8x8xf32>
    %155 = tpu.matmul %153, %154, %cst_57 {dimension_numbers = #tpu.dot_dimension_numbers<[1], [1], [0], [0], [0, 0, 1, 0], [], []>} : vector<8x8xf32>, vector<8x8xf32>, vector<8x8xf32> -> vector<8x8xf32>
    %cst_58 = arith.constant dense<0xFF800000> : vector<8xf32>
    %156 = vector.multi_reduction <maximumf>, %155, %cst_58 [1] : vector<8x8xf32> to vector<8xf32>
    %157 = vector.shape_cast %156 : vector<8xf32> to vector<8x1xf32>
    %158 = vector.broadcast %157 : vector<8x1xf32> to vector<8x8xf32>
    %159 = arith.subf %155, %158 : vector<8x8xf32>
    %160 = math.exp %159 : vector<8x8xf32>
    %cst_59 = arith.constant dense<0.000000e+00> : vector<8xf32>
    %161 = vector.multi_reduction <add>, %160, %cst_59 [1] : vector<8x8xf32> to vector<8xf32>
    %162 = vector.shape_cast %161 : vector<8xf32> to vector<8x1xf32>
    %163 = tpu.reciprocal %162 {approx = true} : vector<8x1xf32> -> vector<8x1xf32>
    %164 = vector.broadcast %163 : vector<8x1xf32> to vector<8x8xf32>
    %165 = arith.mulf %160, %164 : vector<8x8xf32>
    %166 = vector.extract_strided_slice %122 {offsets = [0, 16], sizes = [8, 8], strides = [1, 1]} : vector<8x32xf32> to vector<8x8xf32>
    %cst_60 = arith.constant dense<0.000000e+00> : vector<8x8xf32>
    %167 = tpu.matmul %165, %166, %cst_60 {dimension_numbers = #tpu.dot_dimension_numbers<[1], [0], [0], [1], [0, 0, 1, 1], [], []>} : vector<8x8xf32>, vector<8x8xf32>, vector<8x8xf32> -> vector<8x8xf32>
    %168 = vector.extract_strided_slice %117 {offsets = [0, 24], sizes = [8, 8], strides = [1, 1]} : vector<8x32xf32> to vector<8x8xf32>
    %169 = vector.extract_strided_slice %121 {offsets = [0, 24], sizes = [8, 8], strides = [1, 1]} : vector<8x32xf32> to vector<8x8xf32>
    %cst_61 = arith.constant dense<0.000000e+00> : vector<8x8xf32>
    %170 = tpu.matmul %168, %169, %cst_61 {dimension_numbers = #tpu.dot_dimension_numbers<[1], [1], [0], [0], [0, 0, 1, 0], [], []>} : vector<8x8xf32>, vector<8x8xf32>, vector<8x8xf32> -> vector<8x8xf32>
    %cst_62 = arith.constant dense<0xFF800000> : vector<8xf32>
    %171 = vector.multi_reduction <maximumf>, %170, %cst_62 [1] : vector<8x8xf32> to vector<8xf32>
    %172 = vector.shape_cast %171 : vector<8xf32> to vector<8x1xf32>
    %173 = vector.broadcast %172 : vector<8x1xf32> to vector<8x8xf32>
    %174 = arith.subf %170, %173 : vector<8x8xf32>
    %175 = math.exp %174 : vector<8x8xf32>
    %cst_63 = arith.constant dense<0.000000e+00> : vector<8xf32>
    %176 = vector.multi_reduction <add>, %175, %cst_63 [1] : vector<8x8xf32> to vector<8xf32>
    %177 = vector.shape_cast %176 : vector<8xf32> to vector<8x1xf32>
    %178 = tpu.reciprocal %177 {approx = true} : vector<8x1xf32> -> vector<8x1xf32>
    %179 = vector.broadcast %178 : vector<8x1xf32> to vector<8x8xf32>
    %180 = arith.mulf %175, %179 : vector<8x8xf32>
    %181 = vector.extract_strided_slice %122 {offsets = [0, 24], sizes = [8, 8], strides = [1, 1]} : vector<8x32xf32> to vector<8x8xf32>
    %cst_64 = arith.constant dense<0.000000e+00> : vector<8x8xf32>
    %182 = tpu.matmul %180, %181, %cst_64 {dimension_numbers = #tpu.dot_dimension_numbers<[1], [0], [0], [1], [0, 0, 1, 1], [], []>} : vector<8x8xf32>, vector<8x8xf32>, vector<8x8xf32> -> vector<8x8xf32>
    %183 = tpu.concatenate %137, %152, %167, %182 in 1 : vector<8x8xf32>, vector<8x8xf32>, vector<8x8xf32>, vector<8x8xf32> -> vector<8x32xf32>
    %cst_65 = arith.constant dense<0.000000e+00> : vector<8x32xf32>
    %184 = tpu.matmul %183, %8, %cst_65 {dimension_numbers = #tpu.dot_dimension_numbers<[1], [0], [0], [1], [0, 0, 1, 1], [], []>} : vector<8x32xf32>, vector<32x32xf32>, vector<8x32xf32> -> vector<8x32xf32>
    %185 = vector.broadcast %15 : vector<1x32xf32> to vector<8x32xf32>
    %186 = arith.addf %184, %185 : vector<8x32xf32>
    %187 = arith.addf %114, %186 : vector<8x32xf32>
    %cst_66 = arith.constant dense<0.000000e+00> : vector<8xf32>
    %188 = vector.multi_reduction <add>, %187, %cst_66 [1] : vector<8x32xf32> to vector<8xf32>
    %189 = vector.shape_cast %188 : vector<8xf32> to vector<8x1xf32>
    %cst_67 = arith.constant 3.200000e+01 : f32
    %190 = vector.broadcast %cst_67 : f32 to vector<8x1xf32>
    %191 = arith.divf %189, %190 : vector<8x1xf32>
    %192 = vector.broadcast %191 : vector<8x1xf32> to vector<8x32xf32>
    %193 = arith.subf %187, %192 : vector<8x32xf32>
    %194 = arith.mulf %193, %193 : vector<8x32xf32>
    %cst_68 = arith.constant dense<0.000000e+00> : vector<8xf32>
    %195 = vector.multi_reduction <add>, %194, %cst_68 [1] : vector<8x32xf32> to vector<8xf32>
    %196 = vector.shape_cast %195 : vector<8xf32> to vector<8x1xf32>
    %cst_69 = arith.constant 3.200000e+01 : f32
    %197 = vector.broadcast %cst_69 : f32 to vector<8x1xf32>
    %198 = arith.divf %196, %197 : vector<8x1xf32>
    %199 = vector.broadcast %191 : vector<8x1xf32> to vector<8x32xf32>
    %200 = arith.subf %187, %199 : vector<8x32xf32>
    %cst_70 = arith.constant 9.99999974E-6 : f32
    %201 = vector.broadcast %cst_70 : f32 to vector<8x1xf32>
    %202 = arith.addf %198, %201 : vector<8x1xf32>
    %203 = math.rsqrt %202 : vector<8x1xf32>
    %204 = vector.broadcast %203 : vector<8x1xf32> to vector<8x32xf32>
    %205 = arith.mulf %200, %204 : vector<8x32xf32>
    %206 = vector.broadcast %20 : vector<1x32xf32> to vector<8x32xf32>
    %207 = arith.mulf %205, %206 : vector<8x32xf32>
    %208 = vector.broadcast %21 : vector<1x32xf32> to vector<8x32xf32>
    %209 = arith.addf %207, %208 : vector<8x32xf32>
    %cst_71 = arith.constant dense<0.000000e+00> : vector<8x64xf32>
    %210 = tpu.matmul %209, %9, %cst_71 {dimension_numbers = #tpu.dot_dimension_numbers<[1], [0], [0], [1], [0, 0, 1, 1], [], []>} : vector<8x32xf32>, vector<32x64xf32>, vector<8x64xf32> -> vector<8x64xf32>
    %211 = vector.broadcast %16 : vector<1x64xf32> to vector<8x64xf32>
    %212 = arith.addf %210, %211 : vector<8x64xf32>
    %213 = arith.mulf %212, %212 : vector<8x64xf32>
    %214 = arith.mulf %212, %213 : vector<8x64xf32>
    %cst_72 = arith.constant 4.471500e-02 : f32
    %215 = vector.broadcast %cst_72 : f32 to vector<8x64xf32>
    %216 = arith.mulf %215, %214 : vector<8x64xf32>
    %217 = arith.addf %212, %216 : vector<8x64xf32>
    %cst_73 = arith.constant 0.797884583 : f32
    %218 = vector.broadcast %cst_73 : f32 to vector<8x64xf32>
    %219 = arith.mulf %218, %217 : vector<8x64xf32>
    %220 = math.tanh %219 : vector<8x64xf32>
    %cst_74 = arith.constant 1.000000e+00 : f32
    %221 = vector.broadcast %cst_74 : f32 to vector<8x64xf32>
    %222 = arith.addf %221, %220 : vector<8x64xf32>
    %cst_75 = arith.constant 5.000000e-01 : f32
    %223 = vector.broadcast %cst_75 : f32 to vector<8x64xf32>
    %224 = arith.mulf %223, %222 : vector<8x64xf32>
    %225 = arith.mulf %212, %224 : vector<8x64xf32>
    %cst_76 = arith.constant dense<0.000000e+00> : vector<8x32xf32>
    %226 = tpu.matmul %225, %10, %cst_76 {dimension_numbers = #tpu.dot_dimension_numbers<[1], [1], [0], [0], [0, 0, 1, 0], [], []>} : vector<8x64xf32>, vector<32x64xf32>, vector<8x32xf32> -> vector<8x32xf32>
    %227 = vector.broadcast %17 : vector<1x32xf32> to vector<8x32xf32>
    %228 = arith.addf %226, %227 : vector<8x32xf32>
    %229 = arith.addf %187, %228 : vector<8x32xf32>
    %c0_77 = arith.constant 0 : index
    %c0_78 = arith.constant 0 : index
    %c0_79 = arith.constant 0 : index
    %230 = vector.load %arg5[%c0_77, %c0_78, %c0_79] : memref<1x8x32xf32, #tpu.memory_space<vmem>>, vector<1x8x32xf32>
    %231 = vector.shape_cast %230 : vector<1x8x32xf32> to vector<8x32xf32>
    %232 = vector.shape_cast %229 : vector<8x32xf32> to vector<1x8x32xf32>
    tpu.vector_store %arg5[%c0_77, %c0_78, %c0_79], %232 {strides = array<i32>} : memref<1x8x32xf32, #tpu.memory_space<vmem>>, vector<1x8x32xf32>,
    return
  }
  func.func @transform_0(%arg0: i32) -> (i32, i32, i32) {
    %c0_i32 = arith.constant 0 : i32
    %c0_i32_0 = arith.constant 0 : i32
    %c0_i32_1 = arith.constant 0 : i32
    return %arg0, %c0_i32, %c0_i32_0 : i32, i32, i32
  }
  func.func @transform_1(%arg0: i32) -> (i32, i32, i32) {
    %c0_i32 = arith.constant 0 : i32
    %c0_i32_0 = arith.constant 0 : i32
    %c0_i32_1 = arith.constant 0 : i32
    return %arg0, %c0_i32, %c0_i32_0 : i32, i32, i32
  }
  func.func @transform_2(%arg0: i32) -> (i32, i32) {
    %c0_i32 = arith.constant 0 : i32
    %c0_i32_0 = arith.constant 0 : i32
    %c0_i32_1 = arith.constant 0 : i32
    return %c0_i32, %c0_i32_0 : i32, i32
  }
  func.func @transform_3(%arg0: i32) -> (i32, i32) {
    %c0_i32 = arith.constant 0 : i32
    %c0_i32_0 = arith.constant 0 : i32
    %c0_i32_1 = arith.constant 0 : i32
    return %c0_i32, %c0_i32_0 : i32, i32
  }
  func.func @transform_4(%arg0: i32) -> (i32, i32, i32) {
    %c0_i32 = arith.constant 0 : i32
    %c0_i32_0 = arith.constant 0 : i32
    %c0_i32_1 = arith.constant 0 : i32
    return %arg0, %c0_i32, %c0_i32_0 : i32, i32, i32
  }
}

</mosaic_0001>

<llo_original>
// kernel: tpu_custom_call.1
$region0: #{tpu_custom_call.1}
  #allocation0 [shape = 'u32[]', space=smem, size = 0x4, offset = 0x4, fixed_abs, tag = 'smem constant byte address 0x4 - core index']
  #allocation1 [shape = 'u32[72,128]{1,0:T(1,128)}', space=vmem, size = 0x9000, scoped, tag = 'internal scratch']
  %s0 = inlined_call_operand.hbm [shape: f32[2,8,32], index: 0, kind: input, shape index: {}]
  %s1 = inlined_call_operand.hbm [shape: f32[2,8,32], index: 1, kind: input, shape index: {}]
  %s2 = inlined_call_operand.hbm [shape: f32[224,128], index: 2, kind: input, shape index: {}]
  %s3 = inlined_call_operand.hbm [shape: f32[16,128], index: 3, kind: input, shape index: {}]
  %s4 = inlined_call_operand.hbm [shape: f32[2,8,32], index: 4, kind: output, shape index: {}]
  %s5 = sld [smem:[#allocation0]]
  $region65: #{tpu_custom_call.1} parent=0
    _
  %s7 = ssub.s32 1, %s5
  %s8 = scalar_select 0, %s7, %s5
  $region1: #{tpu_custom_call.1} parent=0
    #allocation2 [shape = 'u8[8192]{0}', space=vmem, size = 0x2000, scoped, tag = 'input window, operand 0']
    #allocation3 [shape = 's32[2]{0}', space=sflag, size = 0x8, scoped, tag = 'scoped memory for tpu_custom_call.1']
    #allocation4 [shape = 's32[2]{0}', space=sflag, size = 0x8, scoped, tag = 'scoped memory for tpu_custom_call.1']
    #allocation5 [shape = 'u8[8192]{0}', space=vmem, size = 0x2000, scoped, tag = 'input window, operand 1']
    #allocation6 [shape = 's32[2]{0}', space=sflag, size = 0x8, scoped, tag = 'scoped memory for tpu_custom_call.1']
    #allocation7 [shape = 'u8[114688]{0}', space=vmem, size = 0x1c000, scoped, tag = 'input window, operand 2, single buffered']
    #allocation8 [shape = 'u8[8192]{0}', space=vmem, size = 0x2000, scoped, tag = 'input window, operand 3, single buffered']
    #allocation9 [shape = 's32[1]{0}', space=sflag, size = 0x4, scoped, tag = 'scoped memory for tpu_custom_call.1']
    #allocation10 [shape = 'u8[8192]{0}', space=vmem, size = 0x2000, scoped, tag = 'output window, operand 0']
    %9 = vsyncpa [#allocation3], 0
    %s10 = scalar_lea.sflag [#allocation3], 1
    %11 = vsyncpa %s10, 0
    %12 = vsyncpa [#allocation6], 0
    %s13 = scalar_lea.sflag [#allocation6], 1
    %14 = vsyncpa %s13, 0
    %15 = vsyncpa [#allocation9], 0
    %16 = vsyncpa [#allocation4], 0
    %s17 = scalar_lea.sflag [#allocation4], 1
    %18 = vsyncpa %s17, 0
    loop: start=0, step=1, limit=4
    $region2: #{tpu_custom_call.1} parent=1 // loop_pre_header
      _
    $region3: #{tpu_custom_call.1} parent=1 // loop_header
      %s20 = sphi 0, %s24
      %p21 = scmp.ge.s32.totalorder %s20, 4
      %s30 = sphi 0, %s32
      %s33 = sphi 0, %s30
      %s34 = sphi 0, %s33
      %s50 = sphi 0, %s34
      %s56 = sphi 0, %s58
      %s59 = sphi 0, %s56
      %s60 = sphi 0, %s59
      %s76 = sphi 0, %s60
      %s80 = sphi 0, %s80
      %s82 = sphi 0, %s80
      %s83 = sphi 0, %s82
      %s97 = sphi 0, %s83
      %s101 = sphi 0, %s101
      %s103 = sphi 0, %s101
      %s104 = sphi 0, %s103
      %s118 = sphi 0, %s104
      %s124 = sphi 0, %s126
      %s127 = sphi 0, %s124
      %s128 = sphi 0, %s127
      %s144 = sphi 0, %s128
    $region4: #{tpu_custom_call.1} parent=1 // loop_header_branch
      %23 = sbr.rel (%p21) target = $region8
    $region5: #{tpu_custom_call.1} parent=1 // loop_body
      %s25 = ssub.s32 %s20, 1
      %s26 = ssub.s32 %s20, 2
      %s27 = sadd.s32 %s20, 1
      %s28 = ssub.s32 %s20, %s27
      %p29 = scmp.eq.s32.totalorder %s28, 0
      %s31 = sadd.s32 %s30, 1
      %s32 = scalar_select %p29, %s30, %s31
      %p35 = pneg %p29
      %p36 = scmp.eq.s32.totalorder %s20, 1
      %p37 = por %p35, %p36
      %p38 = scmp.ne.s32.totalorder %s30, %s33
      %p39 = scmp.eq.s32.totalorder %s20, 0
      %p40 = por %p38, %p39
      %p41 = scmp.ne.s32.totalorder %s30, %s33
      %p42 = scmp.eq.s32.totalorder %s25, 1
      %p43 = por %p41, %p42
      %p44 = scmp.ne.s32.totalorder %s33, %s34
      %p45 = scmp.eq.s32.totalorder %s25, 0
      %p46 = por %p44, %p45
      %p47 = scmp.ne.s32.totalorder %s33, %s34
      %p48 = scmp.eq.s32.totalorder %s26, 1
      %p49 = por %p47, %p48
      %p51 = scmp.ne.s32.totalorder %s34, %s50
      %p52 = scmp.eq.s32.totalorder %s26, 0
      %p53 = por %p51, %p52
      %s54 = ssub.s32 %s20, %s27
      %p55 = scmp.eq.s32.totalorder %s54, 0
      %s57 = sadd.s32 %s56, 1
      %s58 = scalar_select %p55, %s56, %s57
      %p61 = pneg %p55
      %p62 = scmp.eq.s32.totalorder %s20, 1
      %p63 = por %p61, %p62
      %p64 = scmp.ne.s32.totalorder %s56, %s59
      %p65 = scmp.eq.s32.totalorder %s20, 0
      %p66 = por %p64, %p65
      %p67 = scmp.ne.s32.totalorder %s56, %s59
      %p68 = scmp.eq.s32.totalorder %s25, 1
      %p69 = por %p67, %p68
      %p70 = scmp.ne.s32.totalorder %s59, %s60
      %p71 = scmp.eq.s32.totalorder %s25, 0
      %p72 = por %p70, %p71
      %p73 = scmp.ne.s32.totalorder %s59, %s60
      %p74 = scmp.eq.s32.totalorder %s26, 1
      %p75 = por %p73, %p74
      %p77 = scmp.ne.s32.totalorder %s60, %s76
      %p78 = scmp.eq.s32.totalorder %s26, 0
      %p79 = por %p77, %p78
      %s81 = sadd.s32 %s80, 1
      %p84 = scmp.eq.s32.totalorder %s20, 1
      %p85 = scmp.ne.s32.totalorder %s80, %s82
      %p86 = scmp.eq.s32.totalorder %s20, 0
      %p87 = por %p85, %p86
      %p88 = scmp.ne.s32.totalorder %s80, %s82
      %p89 = scmp.eq.s32.totalorder %s25, 1
      %p90 = por %p88, %p89
      %p91 = scmp.ne.s32.totalorder %s82, %s83
      %p92 = scmp.eq.s32.totalorder %s25, 0
      %p93 = por %p91, %p92
      %p94 = scmp.ne.s32.totalorder %s82, %s83
      %p95 = scmp.eq.s32.totalorder %s26, 1
      %p96 = por %p94, %p95
      %p98 = scmp.ne.s32.totalorder %s83, %s97
      %p99 = scmp.eq.s32.totalorder %s26, 0
      %p100 = por %p98, %p99
      %s102 = sadd.s32 %s101, 1
      %p105 = scmp.eq.s32.totalorder %s20, 1
      %p106 = scmp.ne.s32.totalorder %s101, %s103
      %p107 = scmp.eq.s32.totalorder %s20, 0
      %p108 = por %p106, %p107
      %p109 = scmp.ne.s32.totalorder %s101, %s103
      %p110 = scmp.eq.s32.totalorder %s25, 1
      %p111 = por %p109, %p110
      %p112 = scmp.ne.s32.totalorder %s103, %s104
      %p113 = scmp.eq.s32.totalorder %s25, 0
      %p114 = por %p112, %p113
      %p115 = scmp.ne.s32.totalorder %s103, %s104
      %p116 = scmp.eq.s32.totalorder %s26, 1
      %p117 = por %p115, %p116
      %p119 = scmp.ne.s32.totalorder %s104, %s118
      %p120 = scmp.eq.s32.totalorder %s26, 0
      %p121 = por %p119, %p120
      %s122 = ssub.s32 %s20, %s27
      %p123 = scmp.eq.s32.totalorder %s122, 0
      %s125 = sadd.s32 %s124, 1
      %s126 = scalar_select %p123, %s124, %s125
      %p129 = pneg %p123
      %p130 = scmp.eq.s32.totalorder %s20, 1
      %p131 = por %p129, %p130
      %p132 = scmp.ne.s32.totalorder %s124, %s127
      %p133 = scmp.eq.s32.totalorder %s20, 0
      %p134 = por %p132, %p133
      %p135 = scmp.ne.s32.totalorder %s124, %s127
      %p136 = scmp.eq.s32.totalorder %s25, 1
      %p137 = por %p135, %p136
      %p138 = scmp.ne.s32.totalorder %s127, %s128
      %p139 = scmp.eq.s32.totalorder %s25, 0
      %p140 = por %p138, %p139
      %p141 = scmp.ne.s32.totalorder %s127, %s128
      %p142 = scmp.eq.s32.totalorder %s26, 1
      %p143 = por %p141, %p142
      %p145 = scmp.ne.s32.totalorder %s128, %s144
      %p146 = scmp.eq.s32.totalorder %s26, 0
      %p147 = por %p145, %p146
      %p148 = scmp.le.s32.totalorder 1, %s20
      %p149 = scmp.lt.s32.totalorder %s20, 3
      %p150 = pnand %p148, %p149
      %p151 = pneg %p150
      // Predicated region
      $region9: #{tpu_custom_call.1} parent=5 // pred_check
        _
      $region10: #{tpu_custom_call.1} parent=5 // pred_check_branch
        %153 = sbr.rel (%p150) target = $region12
      $region11: #{tpu_custom_call.1} parent=5 // pred_region
        %s154 = ssub.s32 %s20, 1
        // Predicated region
        $region13: #{tpu_custom_call.1} parent=11 // pred_check
          %p155 = pneg %p93
        $region14: #{tpu_custom_call.1} parent=11 // pred_check_branch
          %157 = sbr.rel (%p155) target = $region16
        $region15: #{tpu_custom_call.1} parent=11 // pred_region
          %159 = vsyncadd [#allocation6], 0
          %s160 = sshll.u32 %s2, 4
          %s161 = int_to_ptr.hbm [resolvable:$true] %s160
          %s162 = sshll.u32 [#allocation7], 4
          %s163 = int_to_ptr.vmem [resolvable:$true] %s162
          %168 = dma.hbm_to_vmem [thread:$0]  %s161, 3584, %s163, [#allocation6], 128, 128, 8
        $region16: #{tpu_custom_call.1} parent=11 // pred_fallthru
          _
        // Predicated region
        $region17: #{tpu_custom_call.1} parent=11 // pred_check
          %p169 = pneg %p114
        $region18: #{tpu_custom_call.1} parent=11 // pred_check_branch
          %171 = sbr.rel (%p169) target = $region20
        $region19: #{tpu_custom_call.1} parent=11 // pred_region
          %173 = vsyncadd [#allocation9], 0
          %s174 = sshll.u32 %s3, 4
          %s175 = int_to_ptr.hbm [resolvable:$true] %s174
          %s176 = sshll.u32 [#allocation8], 4
          %s177 = int_to_ptr.vmem [resolvable:$true] %s176
          %182 = dma.hbm_to_vmem [thread:$0]  %s175, 256, %s177, [#allocation9], 128, 128, 8
        $region20: #{tpu_custom_call.1} parent=11 // pred_fallthru
          _
      $region12: #{tpu_custom_call.1} parent=5 // pred_fallthru
        _
      %p183 = scmp.lt.s32.totalorder %s20, 2
      // Predicated region
      $region21: #{tpu_custom_call.1} parent=5 // pred_check
        %p184 = pneg %p183
      $region22: #{tpu_custom_call.1} parent=5 // pred_check_branch
        %186 = sbr.rel (%p184) target = $region24
      $region23: #{tpu_custom_call.1} parent=5 // pred_region
        // Predicated region
        $region25: #{tpu_custom_call.1} parent=23 // pred_check
          %p187 = pneg %p40
        $region26: #{tpu_custom_call.1} parent=23 // pred_check_branch
          %189 = sbr.rel (%p187) target = $region28
        $region27: #{tpu_custom_call.1} parent=23 // pred_region
          %s190 = sand.u32 %s30, 1
          %s191 = scalar_lea.sflag [#allocation3], %s190
          %s192 = sand.u32 %s30, 1
          %s193 = smul.addr %s192, 8
          %s194 = scalar_lea.vmem [#allocation2], %s193
          %196 = vsyncadd %s191, 0
          %s197 = smul.addr %s20, 8
          %s198 = scalar_lea.hbm %s0, %s197
          %s200 = sshll.u32 %s198, 4
          %s201 = int_to_ptr.hbm [resolvable:$true] %s200
          %s202 = sshll.u32 %s194, 4
          %s203 = int_to_ptr.vmem [resolvable:$true] %s202
          %205 = dma.hbm_to_vmem [thread:$0]  %s201, 128, %s203, %s191
        $region28: #{tpu_custom_call.1} parent=23 // pred_fallthru
          _
        // Predicated region
        $region29: #{tpu_custom_call.1} parent=23 // pred_check
          %p206 = pneg %p66
        $region30: #{tpu_custom_call.1} parent=23 // pred_check_branch
          %208 = sbr.rel (%p206) target = $region32
        $region31: #{tpu_custom_call.1} parent=23 // pred_region
          %s209 = sand.u32 %s20, 1
          %s210 = scalar_lea.sflag [#allocation6], %s209
          %s211 = sand.u32 %s56, 1
          %s212 = smul.addr %s211, 8
          %s213 = scalar_lea.vmem [#allocation5], %s212
          %215 = vsyncadd %s210, 0
          %s216 = smul.addr %s20, 8
          %s217 = scalar_lea.hbm %s1, %s216
          %s219 = sshll.u32 %s217, 4
          %s220 = int_to_ptr.hbm [resolvable:$true] %s219
          %s221 = sshll.u32 %s213, 4
          %s222 = int_to_ptr.vmem [resolvable:$true] %s221
          %224 = dma.hbm_to_vmem [thread:$0]  %s220, 128, %s222, %s210
        $region32: #{tpu_custom_call.1} parent=23 // pred_fallthru
          _
      $region24: #{tpu_custom_call.1} parent=5 // pred_fallthru
        _
      %p225 = scmp.le.s32.totalorder 1, %s20
      %p226 = scmp.lt.s32.totalorder %s20, 3
      %p227 = pnand %p225, %p226
      %p228 = pneg %p227
      // Predicated region
      $region33: #{tpu_custom_call.1} parent=5 // pred_check
        _
      $region34: #{tpu_custom_call.1} parent=5 // pred_check_branch
        %230 = sbr.rel (%p227) target = $region36
      $region35: #{tpu_custom_call.1} parent=5 // pred_region
        %s231 = ssub.s32 %s20, 1
        %s232 = sand.u32 %s33, 1
        %s233 = scalar_lea.sflag [#allocation3], %s232
        %s234 = sand.u32 %s33, 1
        %s235 = smul.addr %s234, 8
        %s236 = scalar_lea.vmem [#allocation2], %s235
        // Predicated region
        $region37: #{tpu_custom_call.1} parent=35 // pred_check
          %p237 = pneg %p46
        $region38: #{tpu_custom_call.1} parent=35 // pred_check_branch
          %239 = sbr.rel (%p237) target = $region40
        $region39: #{tpu_custom_call.1} parent=35 // pred_region
          %241 = dma.done %s233, 128
        $region40: #{tpu_custom_call.1} parent=35 // pred_fallthru
          _
        %s242 = sand.u32 %s25, 1
        %s243 = scalar_lea.sflag [#allocation6], %s242
        %s244 = sand.u32 %s59, 1
        %s245 = smul.addr %s244, 8
        %s246 = scalar_lea.vmem [#allocation5], %s245
        // Predicated region
        $region41: #{tpu_custom_call.1} parent=35 // pred_check
          %p247 = pneg %p72
        $region42: #{tpu_custom_call.1} parent=35 // pred_check_branch
          %249 = sbr.rel (%p247) target = $region44
        $region43: #{tpu_custom_call.1} parent=35 // pred_region
          %251 = dma.done %s243, 128
        $region44: #{tpu_custom_call.1} parent=35 // pred_fallthru
          _
        // Predicated region
        $region45: #{tpu_custom_call.1} parent=35 // pred_check
          %p252 = pneg %p93
        $region46: #{tpu_custom_call.1} parent=35 // pred_check_branch
          %254 = sbr.rel (%p252) target = $region48
        $region47: #{tpu_custom_call.1} parent=35 // pred_region
          %256 = dma.done [#allocation6], 3584
        $region48: #{tpu_custom_call.1} parent=35 // pred_fallthru
          _
        // Predicated region
        $region49: #{tpu_custom_call.1} parent=35 // pred_check
          %p257 = pneg %p114
        $region50: #{tpu_custom_call.1} parent=35 // pred_check_branch
          %259 = sbr.rel (%p257) target = $region52
        $region51: #{tpu_custom_call.1} parent=35 // pred_region
          %261 = dma.done [#allocation9], 256
        $region52: #{tpu_custom_call.1} parent=35 // pred_fallthru
          _
        %s262 = sand.u32 %s33, 1
        %s263 = scalar_lea.sflag [#allocation3], %s262
        %s264 = sand.u32 %s33, 1
        %s265 = smul.addr %s264, 8
        %s266 = scalar_lea.vmem [#allocation2], %s265
        %p267 = pneg %p46
        %p268 = pneg %p43
        %s269 = sand.u32 %s25, 1
        %s270 = scalar_lea.sflag [#allocation6], %s269
        %s271 = sand.u32 %s59, 1
        %s272 = smul.addr %s271, 8
        %s273 = scalar_lea.vmem [#allocation5], %s272
        %p274 = pneg %p72
        %p275 = pneg %p69
        %p276 = pneg %p93
        %p277 = pneg %p90
        %p278 = pneg %p114
        %p279 = pneg %p111
        %p280 = pneg %p140
        %p281 = pneg %p137
        %s282 = sand.u32 %s127, 1
        %s283 = scalar_lea.sflag [#allocation4], %s282
        %s284 = sand.u32 %s127, 1
        %s285 = smul.addr %s284, 8
        %s286 = scalar_lea.vmem [#allocation10], %s285
        %v287 = vld [vmem:[%s236] sm:$0xff]
        %v288 = vld [vmem:[%s246] sm:$0xff]
        %v289 = vld [vmem:[#allocation7] sm:$0xff]
        %v290 = vld [vmem:[#allocation7 + $0x8] sm:$0xff]
        %v291 = vld [vmem:[#allocation7 + $0x10] sm:$0xff]
        %v292 = vld [vmem:[#allocation7 + $0x18] sm:$0xff]
        %v293 = vld [vmem:[#allocation7 + $0x20] sm:$0xff]
        %v294 = vld [vmem:[#allocation7 + $0x28] sm:$0xff]
        %v295 = vld [vmem:[#allocation7 + $0x30] sm:$0xff]
        %v296 = vld [vmem:[#allocation7 + $0x38] sm:$0xff]
        %v297 = vld [vmem:[#allocation7 + $0x40] sm:$0xff]
        %v298 = vld [vmem:[#allocation7 + $0x48] sm:$0xff]
        %v299 = vld [vmem:[#allocation7 + $0x50] sm:$0xff]
        %v300 = vld [vmem:[#allocation7 + $0x58] sm:$0xff]
        %v301 = vld [vmem:[#allocation7 + $0x60] sm:$0xff]
        %v302 = vld [vmem:[#allocation7 + $0x68] sm:$0xff]
        %v303 = vld [vmem:[#allocation7 + $0x70] sm:$0xff]
        %v304 = vld [vmem:[#allocation7 + $0x78] sm:$0xff]
        %v305 = vld [vmem:[#allocation7 + $0x80] sm:$0xff]
        %v306 = vld [vmem:[#allocation7 + $0x88] sm:$0xff]
        %v307 = vld [vmem:[#allocation7 + $0x90] sm:$0xff]
        %v308 = vld [vmem:[#allocation7 + $0x98] sm:$0xff]
        %v309 = vld [vmem:[#allocation7 + $0xa0] sm:$0xff]
        %v310 = vld [vmem:[#allocation7 + $0xa8] sm:$0xff]
        %v311 = vld [vmem:[#allocation7 + $0xb0] sm:$0xff]
        %v312 = vld [vmem:[#allocation7 + $0xb8] sm:$0xff]
        %v313 = vld [vmem:[#allocation7 + $0xc0] sm:$0xff]
        %v314 = vld [vmem:[#allocation7 + $0xc8] sm:$0xff]
        %v315 = vld [vmem:[#allocation7 + $0xd0] sm:$0xff]
        %v316 = vld [vmem:[#allocation7 + $0xd8] sm:$0xff]
        %v317 = vld [vmem:[#allocation8] sm:$0x1]
        %v318 = vld [vmem:[#allocation8 + $0x1] sm:$0x1]
        %v319 = vld [vmem:[#allocation8 + $0x2] sm:$0x1]
        %v320 = vld [vmem:[#allocation8 + $0x3] sm:$0x1]
        %v321 = vld [vmem:[#allocation8 + $0x4] sm:$0x1]
        %v322 = vld [vmem:[#allocation8 + $0x5] sm:$0x1]
        %v323 = vld [vmem:[#allocation8 + $0x6] sm:$0x1]
        %v324 = vld [vmem:[#allocation8 + $0x7] sm:$0x1]
        %v325 = vld [vmem:[#allocation8 + $0x8] sm:$0x1]
        %v326 = vld [vmem:[#allocation8 + $0x9] sm:$0x1]
        %v327 = vld [vmem:[#allocation8 + $0xa] sm:$0x1]
        %vm328 = vcmask 261120
        %v329 = vsel %vm328, %v287, 0.0
        %330 = vadd.xlane.f32.xlu0 %v329
        %v331 = vpop.xlane.xlu0 %330
        %v332 = vrcp.pop 32.0
        %v333 = vmul.f32 32.0, %v332
        %v334 = vsub.f32 1.0, %v333
        %v335 = vmul.f32 %v332, %v334
        %v336 = vadd.f32 %v332, %v335
        %vm337 = vweird.f32 %v332
        %v338 = vsel %vm337, %v332, %v336
        %v339 = vmul.f32 %v331, %v338
        %v340 = vsub.f32 %v287, %v339
        %v341 = vmul.f32 %v340, %v340
        %v342 = vsel %vm328, %v341, 0.0
        %343 = vadd.xlane.f32.xlu0 %v342
        %v344 = vpop.xlane.xlu0 %343
        %v345 = vmul.f32 %v344, %v338
        %v346 = vadd.f32 %v345, 1e-05
        %v347 = vrsqrt.pop %v346
        %v348 = vmul.f32 %v347, %v346
        %v349 = vmul.f32 %v348, %v347
        %v350 = vmul.f32 0.5, %v349
        %v351 = vsub.f32 1.5, %v350
        %v352 = vmul.f32 %v347, %v351
        %vm353 = vweird.f32 %v346
        %vm354 = vweird.f32 %v347
        %vm355 = vmor %vm353, %vm354
        %v356 = vsel %vm355, %v347, %v352
        %v357 = vmul.f32 %v340, %v356
        %v358 = vperm.slane %v324, 0
        %v359 = vmul.f32 %v357, %v358
        %v360 = vperm.slane %v325, 0
        %v361 = vadd.f32 %v359, %v360
        %v362 = vperm.slane %v317, 0
        %v364 = vsel %vm328, %v361, 0
        %366 = vmatpush.msra.mxu0 0.0
        %367 = vmatpush.msra.mxu0 0.0
        %368 = vmatpush.msra.mxu0 0.0
        %369 = vmatpush.msra.mxu0 0.0
        %370 = vmatpush.msra.mxu0 0.0
        %371 = vmatpush.msra.mxu0 0.0
        %372 = vmatpush.msra.mxu0 0.0
        %373 = vmatpush.msra.mxu0 0.0
        %374 = vmatpush.msra.mxu0 0.0
        %375 = vmatpush.msra.mxu0 0.0
        %376 = vmatpush.msra.mxu0 0.0
        %377 = vmatpush.msra.mxu0 0.0
        %378 = vmatpush.msra.mxu0 %v292
        %379 = vmatpush.msra.mxu0 %v291
        %380 = vmatpush.msra.mxu0 %v290
        %381 = vmatpush.msra.mxu0 %v289
        %382 = vmatmul.f32.gmra.mxu0 %v364
        %v383 = vpop.f32.mrf.mxu0
        %v384 = vadd.f32 %v362, %v383
        %385 = vdwg.mxu0
        %387 = vrot.lane.b32.xlu0 %v384, 96
        %v388 = vpop.permute.xlu0 %387
        %vm389 = vcmask 64512
        %v390 = vsel %vm389, %v384, 0
        %v392 = vsel %vm389, %v388, 0
        %394 = vmatpush.xpose.msra.mxu0 0.0
        %395 = vmatpush.xpose.msra.mxu0 0.0
        %396 = vmatpush.xpose.msra.mxu0 0.0
        %397 = vmatpush.xpose.msra.mxu0 0.0
        %398 = vmatpush.xpose.msra.mxu0 0.0
        %399 = vmatpush.xpose.msra.mxu0 0.0
        %400 = vmatpush.xpose.msra.mxu0 0.0
        %401 = vmatpush.xpose.msra.mxu0 0.0
        %402 = vmatpush.xpose.msra.mxu0 0.0
        %403 = vmatpush.xpose.msra.mxu0 0.0
        %404 = vmatpush.xpose.msra.mxu0 0.0
        %405 = vmatpush.xpose.msra.mxu0 0.0
        %406 = vmatpush.xpose.msra.mxu0 0.0
        %407 = vmatpush.xpose.msra.mxu0 0.0
        %408 = vmatpush.xpose.msra.mxu0 0.0
        %409 = vmatpush.xpose.msra.mxu0 %v392
        %410 = vmatmul.f32.gmra.mxu0 %v390
        %v411 = vpop.f32.mrf.mxu0
        %v412 = vadd.f32 0.0, %v411
        %413 = vdwg.mxu0
        %v414 = vsel %vm389, %v412, -inf
        %415 = vmax.xlane.f32.xlu0 %v414
        %v416 = vpop.xlane.xlu0 %415
        %v417 = vsub.f32 %v412, %v416
        %v418 = vmul.f32 %v417, 1.442695
        %v419 = vpow.pop %v418
        %v420 = vsel %vm389, %v419, 0.0
        %421 = vadd.xlane.f32.xlu0 %v420
        %v422 = vpop.xlane.xlu0 %421
        %v423 = vrcp.pop %v422
        %v424 = vmul.f32 %v419, %v423
        %425 = vrot.lane.b32.xlu0 %v384, 64
        %v426 = vpop.permute.xlu0 %425
        %v429 = vsel %vm389, %v424, 0
        %431 = vmatpush.msra.mxu0 0.0
        %432 = vmatpush.msra.mxu0 0.0
        %433 = vmatpush.msra.mxu0 0.0
        %434 = vmatpush.msra.mxu0 0.0
        %435 = vmatpush.msra.mxu0 0.0
        %436 = vmatpush.msra.mxu0 0.0
        %437 = vmatpush.msra.mxu0 0.0
        %438 = vmatpush.msra.mxu0 0.0
        %439 = vmatpush.msra.mxu0 0.0
        %440 = vmatpush.msra.mxu0 0.0
        %441 = vmatpush.msra.mxu0 0.0
        %442 = vmatpush.msra.mxu0 0.0
        %443 = vmatpush.msra.mxu0 0.0
        %444 = vmatpush.msra.mxu0 0.0
        %445 = vmatpush.msra.mxu0 0.0
        %446 = vmatpush.msra.mxu0 %v426
        %447 = vmatmul.f32.gmra.mxu0 %v429
        %v448 = vpop.f32.mrf.mxu0
        %v449 = vadd.f32 0.0, %v448
        %450 = vdwg.mxu0
        %451 = vrot.lane.b32.xlu0 %v384, 120
        %v452 = vpop.permute.xlu0 %451
        %453 = vrot.lane.b32.xlu0 %v384, 88
        %v454 = vpop.permute.xlu0 %453
        %v455 = vsel %vm389, %v452, 0
        %v457 = vsel %vm389, %v454, 0
        %459 = vmatpush.xpose.msra.mxu0 0.0
        %460 = vmatpush.xpose.msra.mxu0 0.0
        %461 = vmatpush.xpose.msra.mxu0 0.0
        %462 = vmatpush.xpose.msra.mxu0 0.0
        %463 = vmatpush.xpose.msra.mxu0 0.0
        %464 = vmatpush.xpose.msra.mxu0 0.0
        %465 = vmatpush.xpose.msra.mxu0 0.0
        %466 = vmatpush.xpose.msra.mxu0 0.0
        %467 = vmatpush.xpose.msra.mxu0 0.0
        %468 = vmatpush.xpose.msra.mxu0 0.0
        %469 = vmatpush.xpose.msra.mxu0 0.0
        %470 = vmatpush.xpose.msra.mxu0 0.0
        %471 = vmatpush.xpose.msra.mxu0 0.0
        %472 = vmatpush.xpose.msra.mxu0 0.0
        %473 = vmatpush.xpose.msra.mxu0 0.0
        %474 = vmatpush.xpose.msra.mxu0 %v457
        %475 = vmatmul.f32.gmra.mxu0 %v455
        %v476 = vpop.f32.mrf.mxu0
        %v477 = vadd.f32 0.0, %v476
        %478 = vdwg.mxu0
        %v479 = vsel %vm389, %v477, -inf
        %480 = vmax.xlane.f32.xlu0 %v479
        %v481 = vpop.xlane.xlu0 %480
        %v482 = vsub.f32 %v477, %v481
        %v483 = vmul.f32 %v482, 1.442695
        %v484 = vpow.pop %v483
        %v485 = vsel %vm389, %v484, 0.0
        %486 = vadd.xlane.f32.xlu0 %v485
        %v487 = vpop.xlane.xlu0 %486
        %v488 = vrcp.pop %v487
        %v489 = vmul.f32 %v484, %v488
        %490 = vrot.lane.b32.xlu0 %v384, 56
        %v491 = vpop.permute.xlu0 %490
        %v494 = vsel %vm389, %v489, 0
        %496 = vmatpush.msra.mxu0 0.0
        %497 = vmatpush.msra.mxu0 0.0
        %498 = vmatpush.msra.mxu0 0.0
        %499 = vmatpush.msra.mxu0 0.0
        %500 = vmatpush.msra.mxu0 0.0
        %501 = vmatpush.msra.mxu0 0.0
        %502 = vmatpush.msra.mxu0 0.0
        %503 = vmatpush.msra.mxu0 0.0
        %504 = vmatpush.msra.mxu0 0.0
        %505 = vmatpush.msra.mxu0 0.0
        %506 = vmatpush.msra.mxu0 0.0
        %507 = vmatpush.msra.mxu0 0.0
        %508 = vmatpush.msra.mxu0 0.0
        %509 = vmatpush.msra.mxu0 0.0
        %510 = vmatpush.msra.mxu0 0.0
        %511 = vmatpush.msra.mxu0 %v491
        %512 = vmatmul.f32.gmra.mxu0 %v494
        %v513 = vpop.f32.mrf.mxu0
        %v514 = vadd.f32 0.0, %v513
        %515 = vdwg.mxu0
        %516 = vrot.lane.b32.xlu0 %v384, 112
        %v517 = vpop.permute.xlu0 %516
        %518 = vrot.lane.b32.xlu0 %v384, 80
        %v519 = vpop.permute.xlu0 %518
        %v520 = vsel %vm389, %v517, 0
        %v522 = vsel %vm389, %v519, 0
        %524 = vmatpush.xpose.msra.mxu0 0.0
        %525 = vmatpush.xpose.msra.mxu0 0.0
        %526 = vmatpush.xpose.msra.mxu0 0.0
        %527 = vmatpush.xpose.msra.mxu0 0.0
        %528 = vmatpush.xpose.msra.mxu0 0.0
        %529 = vmatpush.xpose.msra.mxu0 0.0
        %530 = vmatpush.xpose.msra.mxu0 0.0
        %531 = vmatpush.xpose.msra.mxu0 0.0
        %532 = vmatpush.xpose.msra.mxu0 0.0
        %533 = vmatpush.xpose.msra.mxu0 0.0
        %534 = vmatpush.xpose.msra.mxu0 0.0
        %535 = vmatpush.xpose.msra.mxu0 0.0
        %536 = vmatpush.xpose.msra.mxu0 0.0
        %537 = vmatpush.xpose.msra.mxu0 0.0
        %538 = vmatpush.xpose.msra.mxu0 0.0
        %539 = vmatpush.xpose.msra.mxu0 %v522
        %540 = vmatmul.f32.gmra.mxu0 %v520
        %v541 = vpop.f32.mrf.mxu0
        %v542 = vadd.f32 0.0, %v541
        %543 = vdwg.mxu0
        %v544 = vsel %vm389, %v542, -inf
        %545 = vmax.xlane.f32.xlu0 %v544
        %v546 = vpop.xlane.xlu0 %545
        %v547 = vsub.f32 %v542, %v546
        %v548 = vmul.f32 %v547, 1.442695
        %v549 = vpow.pop %v548
        %v550 = vsel %vm389, %v549, 0.0
        %551 = vadd.xlane.f32.xlu0 %v550
        %v552 = vpop.xlane.xlu0 %551
        %v553 = vrcp.pop %v552
        %v554 = vmul.f32 %v549, %v553
        %555 = vrot.lane.b32.xlu0 %v384, 48
        %v556 = vpop.permute.xlu0 %555
        %v559 = vsel %vm389, %v554, 0
        %561 = vmatpush.msra.mxu0 0.0
        %562 = vmatpush.msra.mxu0 0.0
        %563 = vmatpush.msra.mxu0 0.0
        %564 = vmatpush.msra.mxu0 0.0
        %565 = vmatpush.msra.mxu0 0.0
        %566 = vmatpush.msra.mxu0 0.0
        %567 = vmatpush.msra.mxu0 0.0
        %568 = vmatpush.msra.mxu0 0.0
        %569 = vmatpush.msra.mxu0 0.0
        %570 = vmatpush.msra.mxu0 0.0
        %571 = vmatpush.msra.mxu0 0.0
        %572 = vmatpush.msra.mxu0 0.0
        %573 = vmatpush.msra.mxu0 0.0
        %574 = vmatpush.msra.mxu0 0.0
        %575 = vmatpush.msra.mxu0 0.0
        %576 = vmatpush.msra.mxu0 %v556
        %577 = vmatmul.f32.gmra.mxu0 %v559
        %v578 = vpop.f32.mrf.mxu0
        %v579 = vadd.f32 0.0, %v578
        %580 = vdwg.mxu0
        %581 = vrot.lane.b32.xlu0 %v384, 104
        %v582 = vpop.permute.xlu0 %581
        %583 = vrot.lane.b32.xlu0 %v384, 72
        %v584 = vpop.permute.xlu0 %583
        %v585 = vsel %vm389, %v582, 0
        %v587 = vsel %vm389, %v584, 0
        %589 = vmatpush.xpose.msra.mxu0 0.0
        %590 = vmatpush.xpose.msra.mxu0 0.0
        %591 = vmatpush.xpose.msra.mxu0 0.0
        %592 = vmatpush.xpose.msra.mxu0 0.0
        %593 = vmatpush.xpose.msra.mxu0 0.0
        %594 = vmatpush.xpose.msra.mxu0 0.0
        %595 = vmatpush.xpose.msra.mxu0 0.0
        %596 = vmatpush.xpose.msra.mxu0 0.0
        %597 = vmatpush.xpose.msra.mxu0 0.0
        %598 = vmatpush.xpose.msra.mxu0 0.0
        %599 = vmatpush.xpose.msra.mxu0 0.0
        %600 = vmatpush.xpose.msra.mxu0 0.0
        %601 = vmatpush.xpose.msra.mxu0 0.0
        %602 = vmatpush.xpose.msra.mxu0 0.0
        %603 = vmatpush.xpose.msra.mxu0 0.0
        %604 = vmatpush.xpose.msra.mxu0 %v587
        %605 = vmatmul.f32.gmra.mxu0 %v585
        %v606 = vpop.f32.mrf.mxu0
        %v607 = vadd.f32 0.0, %v606
        %608 = vdwg.mxu0
        %v609 = vsel %vm389, %v607, -inf
        %610 = vmax.xlane.f32.xlu0 %v609
        %v611 = vpop.xlane.xlu0 %610
        %v612 = vsub.f32 %v607, %v611
        %v613 = vmul.f32 %v612, 1.442695
        %v614 = vpow.pop %v613
        %v615 = vsel %vm389, %v614, 0.0
        %616 = vadd.xlane.f32.xlu0 %v615
        %v617 = vpop.xlane.xlu0 %616
        %v618 = vrcp.pop %v617
        %v619 = vmul.f32 %v614, %v618
        %620 = vrot.lane.b32.xlu0 %v384, 40
        %v621 = vpop.permute.xlu0 %620
        %v624 = vsel %vm389, %v619, 0
        %626 = vmatpush.msra.mxu0 0.0
        %627 = vmatpush.msra.mxu0 0.0
        %628 = vmatpush.msra.mxu0 0.0
        %629 = vmatpush.msra.mxu0 0.0
        %630 = vmatpush.msra.mxu0 0.0
        %631 = vmatpush.msra.mxu0 0.0
        %632 = vmatpush.msra.mxu0 0.0
        %633 = vmatpush.msra.mxu0 0.0
        %634 = vmatpush.msra.mxu0 0.0
        %635 = vmatpush.msra.mxu0 0.0
        %636 = vmatpush.msra.mxu0 0.0
        %637 = vmatpush.msra.mxu0 0.0
        %638 = vmatpush.msra.mxu0 0.0
        %639 = vmatpush.msra.mxu0 0.0
        %640 = vmatpush.msra.mxu0 0.0
        %641 = vmatpush.msra.mxu0 %v621
        %642 = vmatmul.f32.gmra.mxu0 %v624
        %v643 = vpop.f32.mrf.mxu0
        %v644 = vadd.f32 0.0, %v643
        %645 = vdwg.mxu0
        %647 = vrot.lane.b32.xlu0 %v514, 8
        %v648 = vpop.permute.xlu0 %647
        %651 = vrot.lane.b32.xlu0 %v579, 16
        %v652 = vpop.permute.xlu0 %651
        %655 = vrot.lane.b32.xlu0 %v644, 24
        %v656 = vpop.permute.xlu0 %655
        %v658 = vsel %vm389, %v449, %v648
        %vm659 = vcmask 130048
        %v660 = vsel %vm659, %v658, %v652
        %vm661 = vcmask 195584
        %v662 = vsel %vm661, %v660, %v656
        %v663 = vperm.slane %v318, 0
        %v665 = vsel %vm328, %v662, 0
        %667 = vmatpush.msra.mxu0 0.0
        %668 = vmatpush.msra.mxu0 0.0
        %669 = vmatpush.msra.mxu0 0.0
        %670 = vmatpush.msra.mxu0 0.0
        %671 = vmatpush.msra.mxu0 0.0
        %672 = vmatpush.msra.mxu0 0.0
        %673 = vmatpush.msra.mxu0 0.0
        %674 = vmatpush.msra.mxu0 0.0
        %675 = vmatpush.msra.mxu0 0.0
        %676 = vmatpush.msra.mxu0 0.0
        %677 = vmatpush.msra.mxu0 0.0
        %678 = vmatpush.msra.mxu0 0.0
        %679 = vmatpush.msra.mxu0 %v296
        %680 = vmatpush.msra.mxu0 %v295
        %681 = vmatpush.msra.mxu0 %v294
        %682 = vmatpush.msra.mxu0 %v293
        %683 = vmatmul.f32.gmra.mxu0 %v665
        %v684 = vpop.f32.mrf.mxu0
        %v685 = vadd.f32 %v663, %v684
        %686 = vdwg.mxu0
        %v687 = vadd.f32 %v287, %v685
        %v688 = vperm.slane %v319, 0
        %v690 = vsel %vm328, %v687, 0
        %692 = vmatpush.msra.mxu0 0.0
        %693 = vmatpush.msra.mxu0 0.0
        %694 = vmatpush.msra.mxu0 0.0
        %695 = vmatpush.msra.mxu0 0.0
        %696 = vmatpush.msra.mxu0 0.0
        %697 = vmatpush.msra.mxu0 0.0
        %698 = vmatpush.msra.mxu0 0.0
        %699 = vmatpush.msra.mxu0 0.0
        %700 = vmatpush.msra.mxu0 0.0
        %701 = vmatpush.msra.mxu0 0.0
        %702 = vmatpush.msra.mxu0 0.0
        %703 = vmatpush.msra.mxu0 0.0
        %704 = vmatpush.msra.mxu0 %v300
        %705 = vmatpush.msra.mxu0 %v299
        %706 = vmatpush.msra.mxu0 %v298
        %707 = vmatpush.msra.mxu0 %v297
        %708 = vmatmul.f32.gmra.mxu0 %v690
        %v709 = vpop.f32.mrf.mxu0
        %v710 = vadd.f32 %v688, %v709
        %711 = vdwg.mxu0
        %v712 = vperm.slane %v320, 0
        %v714 = vsel %vm328, %v288, 0
        %716 = vmatpush.msra.mxu0 0.0
        %717 = vmatpush.msra.mxu0 0.0
        %718 = vmatpush.msra.mxu0 0.0
        %719 = vmatpush.msra.mxu0 0.0
        %720 = vmatpush.msra.mxu0 0.0
        %721 = vmatpush.msra.mxu0 0.0
        %722 = vmatpush.msra.mxu0 0.0
        %723 = vmatpush.msra.mxu0 0.0
        %724 = vmatpush.msra.mxu0 0.0
        %725 = vmatpush.msra.mxu0 0.0
        %726 = vmatpush.msra.mxu0 0.0
        %727 = vmatpush.msra.mxu0 0.0
        %728 = vmatpush.msra.mxu0 %v304
        %729 = vmatpush.msra.mxu0 %v303
        %730 = vmatpush.msra.mxu0 %v302
        %731 = vmatpush.msra.mxu0 %v301
        %732 = vmatmul.f32.gmra.mxu0 %v714
        %v733 = vpop.f32.mrf.mxu0
        %v734 = vadd.f32 %v712, %v733
        %735 = vdwg.mxu0
        %v737 = vsel %vm389, %v710, 0
        %v740 = vsel %vm389, %v734, 0
        %742 = vmatpush.xpose.msra.mxu0 0.0
        %743 = vmatpush.xpose.msra.mxu0 0.0
        %744 = vmatpush.xpose.msra.mxu0 0.0
        %745 = vmatpush.xpose.msra.mxu0 0.0
        %746 = vmatpush.xpose.msra.mxu0 0.0
        %747 = vmatpush.xpose.msra.mxu0 0.0
        %748 = vmatpush.xpose.msra.mxu0 0.0
        %749 = vmatpush.xpose.msra.mxu0 0.0
        %750 = vmatpush.xpose.msra.mxu0 0.0
        %751 = vmatpush.xpose.msra.mxu0 0.0
        %752 = vmatpush.xpose.msra.mxu0 0.0
        %753 = vmatpush.xpose.msra.mxu0 0.0
        %754 = vmatpush.xpose.msra.mxu0 0.0
        %755 = vmatpush.xpose.msra.mxu0 0.0
        %756 = vmatpush.xpose.msra.mxu0 0.0
        %757 = vmatpush.xpose.msra.mxu0 %v740
        %758 = vmatmul.f32.gmra.mxu0 %v737
        %v759 = vpop.f32.mrf.mxu0
        %v760 = vadd.f32 0.0, %v759
        %761 = vdwg.mxu0
        %v762 = vsel %vm389, %v760, -inf
        %763 = vmax.xlane.f32.xlu0 %v762
        %v764 = vpop.xlane.xlu0 %763
        %v765 = vsub.f32 %v760, %v764
        %v766 = vmul.f32 %v765, 1.442695
        %v767 = vpow.pop %v766
        %v768 = vsel %vm389, %v767, 0.0
        %769 = vadd.xlane.f32.xlu0 %v768
        %v770 = vpop.xlane.xlu0 %769
        %v771 = vrcp.pop %v770
        %v772 = vmul.f32 %v767, %v771
        %773 = vrot.lane.b32.xlu0 %v734, 96
        %v774 = vpop.permute.xlu0 %773
        %v777 = vsel %vm389, %v772, 0
        %779 = vmatpush.msra.mxu0 0.0
        %780 = vmatpush.msra.mxu0 0.0
        %781 = vmatpush.msra.mxu0 0.0
        %782 = vmatpush.msra.mxu0 0.0
        %783 = vmatpush.msra.mxu0 0.0
        %784 = vmatpush.msra.mxu0 0.0
        %785 = vmatpush.msra.mxu0 0.0
        %786 = vmatpush.msra.mxu0 0.0
        %787 = vmatpush.msra.mxu0 0.0
        %788 = vmatpush.msra.mxu0 0.0
        %789 = vmatpush.msra.mxu0 0.0
        %790 = vmatpush.msra.mxu0 0.0
        %791 = vmatpush.msra.mxu0 0.0
        %792 = vmatpush.msra.mxu0 0.0
        %793 = vmatpush.msra.mxu0 0.0
        %794 = vmatpush.msra.mxu0 %v774
        %795 = vmatmul.f32.gmra.mxu0 %v777
        %v796 = vpop.f32.mrf.mxu0
        %v797 = vadd.f32 0.0, %v796
        %798 = vdwg.mxu0
        %799 = vrot.lane.b32.xlu0 %v710, 120
        %v800 = vpop.permute.xlu0 %799
        %801 = vrot.lane.b32.xlu0 %v734, 120
        %v802 = vpop.permute.xlu0 %801
        %v803 = vsel %vm389, %v800, 0
        %v805 = vsel %vm389, %v802, 0
        %807 = vmatpush.xpose.msra.mxu0 0.0
        %808 = vmatpush.xpose.msra.mxu0 0.0
        %809 = vmatpush.xpose.msra.mxu0 0.0
        %810 = vmatpush.xpose.msra.mxu0 0.0
        %811 = vmatpush.xpose.msra.mxu0 0.0
        %812 = vmatpush.xpose.msra.mxu0 0.0
        %813 = vmatpush.xpose.msra.mxu0 0.0
        %814 = vmatpush.xpose.msra.mxu0 0.0
        %815 = vmatpush.xpose.msra.mxu0 0.0
        %816 = vmatpush.xpose.msra.mxu0 0.0
        %817 = vmatpush.xpose.msra.mxu0 0.0
        %818 = vmatpush.xpose.msra.mxu0 0.0
        %819 = vmatpush.xpose.msra.mxu0 0.0
        %820 = vmatpush.xpose.msra.mxu0 0.0
        %821 = vmatpush.xpose.msra.mxu0 0.0
        %822 = vmatpush.xpose.msra.mxu0 %v805
        %823 = vmatmul.f32.gmra.mxu0 %v803
        %v824 = vpop.f32.mrf.mxu0
        %v825 = vadd.f32 0.0, %v824
        %826 = vdwg.mxu0
        %v827 = vsel %vm389, %v825, -inf
        %828 = vmax.xlane.f32.xlu0 %v827
        %v829 = vpop.xlane.xlu0 %828
        %v830 = vsub.f32 %v825, %v829
        %v831 = vmul.f32 %v830, 1.442695
        %v832 = vpow.pop %v831
        %v833 = vsel %vm389, %v832, 0.0
        %834 = vadd.xlane.f32.xlu0 %v833
        %v835 = vpop.xlane.xlu0 %834
        %v836 = vrcp.pop %v835
        %v837 = vmul.f32 %v832, %v836
        %838 = vrot.lane.b32.xlu0 %v734, 88
        %v839 = vpop.permute.xlu0 %838
        %v842 = vsel %vm389, %v837, 0
        %844 = vmatpush.msra.mxu0 0.0
        %845 = vmatpush.msra.mxu0 0.0
        %846 = vmatpush.msra.mxu0 0.0
        %847 = vmatpush.msra.mxu0 0.0
        %848 = vmatpush.msra.mxu0 0.0
        %849 = vmatpush.msra.mxu0 0.0
        %850 = vmatpush.msra.mxu0 0.0
        %851 = vmatpush.msra.mxu0 0.0
        %852 = vmatpush.msra.mxu0 0.0
        %853 = vmatpush.msra.mxu0 0.0
        %854 = vmatpush.msra.mxu0 0.0
        %855 = vmatpush.msra.mxu0 0.0
        %856 = vmatpush.msra.mxu0 0.0
        %857 = vmatpush.msra.mxu0 0.0
        %858 = vmatpush.msra.mxu0 0.0
        %859 = vmatpush.msra.mxu0 %v839
        %860 = vmatmul.f32.gmra.mxu0 %v842
        %v861 = vpop.f32.mrf.mxu0
        %v862 = vadd.f32 0.0, %v861
        %863 = vdwg.mxu0
        %864 = vrot.lane.b32.xlu0 %v710, 112
        %v865 = vpop.permute.xlu0 %864
        %866 = vrot.lane.b32.xlu0 %v734, 112
        %v867 = vpop.permute.xlu0 %866
        %v868 = vsel %vm389, %v865, 0
        %v870 = vsel %vm389, %v867, 0
        %872 = vmatpush.xpose.msra.mxu0 0.0
        %873 = vmatpush.xpose.msra.mxu0 0.0
        %874 = vmatpush.xpose.msra.mxu0 0.0
        %875 = vmatpush.xpose.msra.mxu0 0.0
        %876 = vmatpush.xpose.msra.mxu0 0.0
        %877 = vmatpush.xpose.msra.mxu0 0.0
        %878 = vmatpush.xpose.msra.mxu0 0.0
        %879 = vmatpush.xpose.msra.mxu0 0.0
        %880 = vmatpush.xpose.msra.mxu0 0.0
        %881 = vmatpush.xpose.msra.mxu0 0.0
        %882 = vmatpush.xpose.msra.mxu0 0.0
        %883 = vmatpush.xpose.msra.mxu0 0.0
        %884 = vmatpush.xpose.msra.mxu0 0.0
        %885 = vmatpush.xpose.msra.mxu0 0.0
        %886 = vmatpush.xpose.msra.mxu0 0.0
        %887 = vmatpush.xpose.msra.mxu0 %v870
        %888 = vmatmul.f32.gmra.mxu0 %v868
        %v889 = vpop.f32.mrf.mxu0
        %v890 = vadd.f32 0.0, %v889
        %891 = vdwg.mxu0
        %v892 = vsel %vm389, %v890, -inf
        %893 = vmax.xlane.f32.xlu0 %v892
        %v894 = vpop.xlane.xlu0 %893
        %v895 = vsub.f32 %v890, %v894
        %v896 = vmul.f32 %v895, 1.442695
        %v897 = vpow.pop %v896
        %v898 = vsel %vm389, %v897, 0.0
        %899 = vadd.xlane.f32.xlu0 %v898
        %v900 = vpop.xlane.xlu0 %899
        %v901 = vrcp.pop %v900
        %v902 = vmul.f32 %v897, %v901
        %903 = vrot.lane.b32.xlu0 %v734, 80
        %v904 = vpop.permute.xlu0 %903
        %v907 = vsel %vm389, %v902, 0
        %909 = vmatpush.msra.mxu0 0.0
        %910 = vmatpush.msra.mxu0 0.0
        %911 = vmatpush.msra.mxu0 0.0
        %912 = vmatpush.msra.mxu0 0.0
        %913 = vmatpush.msra.mxu0 0.0
        %914 = vmatpush.msra.mxu0 0.0
        %915 = vmatpush.msra.mxu0 0.0
        %916 = vmatpush.msra.mxu0 0.0
        %917 = vmatpush.msra.mxu0 0.0
        %918 = vmatpush.msra.mxu0 0.0
        %919 = vmatpush.msra.mxu0 0.0
        %920 = vmatpush.msra.mxu0 0.0
        %921 = vmatpush.msra.mxu0 0.0
        %922 = vmatpush.msra.mxu0 0.0
        %923 = vmatpush.msra.mxu0 0.0
        %924 = vmatpush.msra.mxu0 %v904
        %925 = vmatmul.f32.gmra.mxu0 %v907
        %v926 = vpop.f32.mrf.mxu0
        %v927 = vadd.f32 0.0, %v926
        %928 = vdwg.mxu0
        %929 = vrot.lane.b32.xlu0 %v710, 104
        %v930 = vpop.permute.xlu0 %929
        %931 = vrot.lane.b32.xlu0 %v734, 104
        %v932 = vpop.permute.xlu0 %931
        %v933 = vsel %vm389, %v930, 0
        %v935 = vsel %vm389, %v932, 0
        %937 = vmatpush.xpose.msra.mxu0 0.0
        %938 = vmatpush.xpose.msra.mxu0 0.0
        %939 = vmatpush.xpose.msra.mxu0 0.0
        %940 = vmatpush.xpose.msra.mxu0 0.0
        %941 = vmatpush.xpose.msra.mxu0 0.0
        %942 = vmatpush.xpose.msra.mxu0 0.0
        %943 = vmatpush.xpose.msra.mxu0 0.0
        %944 = vmatpush.xpose.msra.mxu0 0.0
        %945 = vmatpush.xpose.msra.mxu0 0.0
        %946 = vmatpush.xpose.msra.mxu0 0.0
        %947 = vmatpush.xpose.msra.mxu0 0.0
        %948 = vmatpush.xpose.msra.mxu0 0.0
        %949 = vmatpush.xpose.msra.mxu0 0.0
        %950 = vmatpush.xpose.msra.mxu0 0.0
        %951 = vmatpush.xpose.msra.mxu0 0.0
        %952 = vmatpush.xpose.msra.mxu0 %v935
        %953 = vmatmul.f32.gmra.mxu0 %v933
        %v954 = vpop.f32.mrf.mxu0
        %v955 = vadd.f32 0.0, %v954
        %956 = vdwg.mxu0
        %v957 = vsel %vm389, %v955, -inf
        %958 = vmax.xlane.f32.xlu0 %v957
        %v959 = vpop.xlane.xlu0 %958
        %v960 = vsub.f32 %v955, %v959
        %v961 = vmul.f32 %v960, 1.442695
        %v962 = vpow.pop %v961
        %v963 = vsel %vm389, %v962, 0.0
        %964 = vadd.xlane.f32.xlu0 %v963
        %v965 = vpop.xlane.xlu0 %964
        %v966 = vrcp.pop %v965
        %v967 = vmul.f32 %v962, %v966
        %968 = vrot.lane.b32.xlu0 %v734, 72
        %v969 = vpop.permute.xlu0 %968
        %v972 = vsel %vm389, %v967, 0
        %974 = vmatpush.msra.mxu0 0.0
        %975 = vmatpush.msra.mxu0 0.0
        %976 = vmatpush.msra.mxu0 0.0
        %977 = vmatpush.msra.mxu0 0.0
        %978 = vmatpush.msra.mxu0 0.0
        %979 = vmatpush.msra.mxu0 0.0
        %980 = vmatpush.msra.mxu0 0.0
        %981 = vmatpush.msra.mxu0 0.0
        %982 = vmatpush.msra.mxu0 0.0
        %983 = vmatpush.msra.mxu0 0.0
        %984 = vmatpush.msra.mxu0 0.0
        %985 = vmatpush.msra.mxu0 0.0
        %986 = vmatpush.msra.mxu0 0.0
        %987 = vmatpush.msra.mxu0 0.0
        %988 = vmatpush.msra.mxu0 0.0
        %989 = vmatpush.msra.mxu0 %v969
        %990 = vmatmul.f32.gmra.mxu0 %v972
        %v991 = vpop.f32.mrf.mxu0
        %v992 = vadd.f32 0.0, %v991
        %993 = vdwg.mxu0
        %995 = vrot.lane.b32.xlu0 %v862, 8
        %v996 = vpop.permute.xlu0 %995
        %999 = vrot.lane.b32.xlu0 %v927, 16
        %v1000 = vpop.permute.xlu0 %999
        %1003 = vrot.lane.b32.xlu0 %v992, 24
        %v1004 = vpop.permute.xlu0 %1003
        %v1006 = vsel %vm389, %v797, %v996
        %v1007 = vsel %vm659, %v1006, %v1000
        %v1008 = vsel %vm661, %v1007, %v1004
        %v1009 = vperm.slane %v321, 0
        %v1011 = vsel %vm328, %v1008, 0
        %1013 = vmatpush.msra.mxu0 0.0
        %1014 = vmatpush.msra.mxu0 0.0
        %1015 = vmatpush.msra.mxu0 0.0
        %1016 = vmatpush.msra.mxu0 0.0
        %1017 = vmatpush.msra.mxu0 0.0
        %1018 = vmatpush.msra.mxu0 0.0
        %1019 = vmatpush.msra.mxu0 0.0
        %1020 = vmatpush.msra.mxu0 0.0
        %1021 = vmatpush.msra.mxu0 0.0
        %1022 = vmatpush.msra.mxu0 0.0
        %1023 = vmatpush.msra.mxu0 0.0
        %1024 = vmatpush.msra.mxu0 0.0
        %1025 = vmatpush.msra.mxu0 %v308
        %1026 = vmatpush.msra.mxu0 %v307
        %1027 = vmatpush.msra.mxu0 %v306
        %1028 = vmatpush.msra.mxu0 %v305
        %1029 = vmatmul.f32.gmra.mxu0 %v1011
        %v1030 = vpop.f32.mrf.mxu0
        %v1031 = vadd.f32 %v1009, %v1030
        %1032 = vdwg.mxu0
        %v1033 = vadd.f32 %v687, %v1031
        %v1034 = vsel %vm328, %v1033, 0.0
        %1035 = vadd.xlane.f32.xlu0 %v1034
        %v1036 = vpop.xlane.xlu0 %1035
        %v1037 = vmul.f32 %v1036, %v338
        %v1038 = vsub.f32 %v1033, %v1037
        %v1039 = vmul.f32 %v1038, %v1038
        %v1040 = vsel %vm328, %v1039, 0.0
        %1041 = vadd.xlane.f32.xlu0 %v1040
        %v1042 = vpop.xlane.xlu0 %1041
        %v1043 = vmul.f32 %v1042, %v338
        %v1044 = vadd.f32 %v1043, 1e-05
        %v1045 = vrsqrt.pop %v1044
        %v1046 = vmul.f32 %v1045, %v1044
        %v1047 = vmul.f32 %v1046, %v1045
        %v1048 = vmul.f32 0.5, %v1047
        %v1049 = vsub.f32 1.5, %v1048
        %v1050 = vmul.f32 %v1045, %v1049
        %vm1051 = vweird.f32 %v1044
        %vm1052 = vweird.f32 %v1045
        %vm1053 = vmor %vm1051, %vm1052
        %v1054 = vsel %vm1053, %v1045, %v1050
        %v1055 = vmul.f32 %v1038, %v1054
        %v1056 = vperm.slane %v326, 0
        %v1057 = vmul.f32 %v1055, %v1056
        %v1058 = vperm.slane %v327, 0
        %v1059 = vadd.f32 %v1057, %v1058
        %v1060 = vperm.slane %v322, 0
        %v1062 = vsel %vm328, %v1059, 0
        %1064 = vmatpush.msra.mxu0 0.0
        %1065 = vmatpush.msra.mxu0 0.0
        %1066 = vmatpush.msra.mxu0 0.0
        %1067 = vmatpush.msra.mxu0 0.0
        %1068 = vmatpush.msra.mxu0 0.0
        %1069 = vmatpush.msra.mxu0 0.0
        %1070 = vmatpush.msra.mxu0 0.0
        %1071 = vmatpush.msra.mxu0 0.0
        %1072 = vmatpush.msra.mxu0 0.0
        %1073 = vmatpush.msra.mxu0 0.0
        %1074 = vmatpush.msra.mxu0 0.0
        %1075 = vmatpush.msra.mxu0 0.0
        %1076 = vmatpush.msra.mxu0 %v312
        %1077 = vmatpush.msra.mxu0 %v311
        %1078 = vmatpush.msra.mxu0 %v310
        %1079 = vmatpush.msra.mxu0 %v309
        %1080 = vmatmul.f32.gmra.mxu0 %v1062
        %v1081 = vpop.f32.mrf.mxu0
        %v1082 = vadd.f32 %v1060, %v1081
        %1083 = vdwg.mxu0
        %v1084 = vmul.f32 %v1082, %v1082
        %v1085 = vmul.f32 %v1082, %v1084
        %v1086 = vmul.f32 %v1085, 0.044715
        %v1087 = vadd.f32 %v1082, %v1086
        %v1088 = vmul.f32 %v1087, 0.7978846
        %v1089 = vtanh.pop %v1088
        %v1090 = vadd.f32 %v1089, 1.0
        %v1091 = vmul.f32 %v1090, 0.5
        %v1092 = vmul.f32 %v1082, %v1091
        %v1093 = vperm.slane %v323, 0
        %vm1094 = vcmask 523264
        %v1096 = vsel %vm1094, %v1092, 0
        %v1099 = vsel %vm1094, %v313, 0
        %v1102 = vsel %vm1094, %v314, 0
        %v1105 = vsel %vm1094, %v315, 0
        %v1108 = vsel %vm1094, %v316, 0
        %1110 = vmatpush.xpose.msra.mxu0 0.0
        %1111 = vmatpush.xpose.msra.mxu0 0.0
        %1112 = vmatpush.xpose.msra.mxu0 0.0
        %1113 = vmatpush.xpose.msra.mxu0 0.0
        %1114 = vmatpush.xpose.msra.mxu0 0.0
        %1115 = vmatpush.xpose.msra.mxu0 0.0
        %1116 = vmatpush.xpose.msra.mxu0 0.0
        %1117 = vmatpush.xpose.msra.mxu0 0.0
        %1118 = vmatpush.xpose.msra.mxu0 0.0
        %1119 = vmatpush.xpose.msra.mxu0 0.0
        %1120 = vmatpush.xpose.msra.mxu0 0.0
        %1121 = vmatpush.xpose.msra.mxu0 0.0
        %1122 = vmatpush.xpose.msra.mxu0 %v1108
        %1123 = vmatpush.xpose.msra.mxu0 %v1105
        %1124 = vmatpush.xpose.msra.mxu0 %v1102
        %1125 = vmatpush.xpose.msra.mxu0 %v1099
        %1126 = vmatmul.f32.gmra.mxu0 %v1096
        %v1127 = vpop.f32.mrf.mxu0
        %v1128 = vadd.f32 %v1093, %v1127
        %1129 = vdwg.mxu0
        %v1130 = vadd.f32 %v1033, %v1128
        %1131 = vst.msk [vmem:[%s286] sm:$0xff] %vm328, %v1130
        %s1132 = sand.u32 %s127, 1
        %s1133 = scalar_lea.sflag [#allocation4], %s1132
        %s1134 = sand.u32 %s127, 1
        %s1135 = smul.addr %s1134, 8
        %s1136 = scalar_lea.vmem [#allocation10], %s1135
        // Predicated region
        $region53: #{tpu_custom_call.1} parent=35 // pred_check
          %p1137 = pneg %p137
        $region54: #{tpu_custom_call.1} parent=35 // pred_check_branch
          %1139 = sbr.rel (%p1137) target = $region56
        $region55: #{tpu_custom_call.1} parent=35 // pred_region
          %1141 = vsyncadd %s1133, 0
          %s1142 = smul.addr %s25, 8
          %s1143 = scalar_lea.hbm %s4, %s1142
          %s1145 = sshll.u32 %s1136, 4
          %s1146 = int_to_ptr.vmem [resolvable:$true] %s1145
          %s1147 = sshll.u32 %s1143, 4
          %s1148 = int_to_ptr.hbm [resolvable:$true] %s1147
          %1150 = dma.vmem_to_hbm [thread:$0]  %s1146, 128, %s1148, %s1133
        $region56: #{tpu_custom_call.1} parent=35 // pred_fallthru
          _
      $region36: #{tpu_custom_call.1} parent=5 // pred_fallthru
        _
      %p1151 = scmp.le.s32.totalorder 2, %s20
      // Predicated region
      $region57: #{tpu_custom_call.1} parent=5 // pred_check
        %p1152 = pneg %p1151
      $region58: #{tpu_custom_call.1} parent=5 // pred_check_branch
        %1154 = sbr.rel (%p1152) target = $region60
      $region59: #{tpu_custom_call.1} parent=5 // pred_region
        %s1155 = ssub.s32 %s20, 2
        // Predicated region
        $region61: #{tpu_custom_call.1} parent=59 // pred_check
          %p1156 = pneg %p143
        $region62: #{tpu_custom_call.1} parent=59 // pred_check_branch
          %1158 = sbr.rel (%p1156) target = $region64
        $region63: #{tpu_custom_call.1} parent=59 // pred_region
          %s1159 = sand.u32 %s128, 1
          %s1160 = scalar_lea.sflag [#allocation4], %s1159
          %s1161 = sand.u32 %s128, 1
          %s1162 = smul.addr %s1161, 8
          %s1163 = scalar_lea.vmem [#allocation10], %s1162
          %1165 = dma.done %s1160, 128
        $region64: #{tpu_custom_call.1} parent=59 // pred_fallthru
          _
      $region60: #{tpu_custom_call.1} parent=5 // pred_fallthru
        _
    $region6: #{tpu_custom_call.1} parent=1 // loop_footer
      %s24 = sadd.s32 1, %s20
    $region7: #{tpu_custom_call.1} parent=1 // loop_footer_branch
      %19 = sbr.rel target = $region3
    $region8: #{tpu_custom_call.1} parent=1 // loop_exit
      _
    %1166 = vsyncpa [#allocation3], 1
    %s1167 = scalar_lea.sflag [#allocation3], 1
    %1168 = vsyncpa %s1167, 1
    %1169 = vsyncpa [#allocation6], 1
    %s1170 = scalar_lea.sflag [#allocation6], 1
    %1171 = vsyncpa %s1170, 1
    %1172 = vsyncpa [#allocation9], 1
    %1173 = vsyncpa [#allocation4], 1
    %s1174 = scalar_lea.sflag [#allocation4], 1
    %1175 = vsyncpa %s1174, 1

</llo_original>
